<compile_context>
chip_gen: v7x
topology: tpu7x:2x2x1
jax: 0.10.0
libtpu: 0.0.40
codegen_flags: <defaults>
</compile_context>

<pallas_src>
import functools

import jax
import jax.numpy as jnp
from jax.experimental import pallas as pl
from jax.experimental.pallas import tpu as pltpu


# ----------------------------------------------------------------------------
# The single fused Pallas kernel (one grid step == B images of the batch)
# ----------------------------------------------------------------------------
def _fused_forward_kernel(x_ref, w1_ref, w2_ref, b2map_ref, int_ref, sel_ref,
                          o_ref, buf_ref, im_ref, *, nb, cin, cmid, h, w, margin):
    """pad0->conv1(+relu)->bn1->conv2->add->relu->maxpool->softmax for B images.

    Layout: activations live in a padded-flat layout (C, hp*wp); `buf_ref` is a
    (2*cmid, 2*margin + hp*wp) shift buffer (rows [0,cmid): x / masked conv1
    output, rows [cmid,2*cmid): pre-pool activation); `im_ref` is the stacked
    im2col scratch (9*cmid rows + one constant-ones row for conv1's bias).
    """
    hp, wp = h + 2, w + 2
    P = hp * wp
    K2 = 9 * cmid

    # Per-step init.  Deliberately NOT guarded by program_id==0: the grid axis is
    # "parallel", so on a 2-TC chip each core has its OWN scratch and a pid==0
    # guard would leave the second core's buffers uninitialized (NaN hazards).
    buf_ref[...] = jnp.zeros_like(buf_ref)
    im_ref[K2:K2 + 1, :] = jnp.ones((1, P), jnp.float32)   # bias row for conv1

    def fill_im2col():
        # In-kernel im2col: each 3x3 tap is a constant-lane-shift slice of the
        # buf interior, stacked along K so each conv is ONE MXU dot.
        for t in range(9):
            s = (t // 3 - 1) * wp + (t % 3 - 1)
            im_ref[t * cmid:(t + 1) * cmid, :] = (
                buf_ref[0:cmid, margin + s: margin + s + P])

    results = []
    for b in range(nb):
        # ---- pad0 folded in-kernel: scatter the H rows of image b into the
        #      (zero) 18x18 interior of buf rows [0, cin) -----------------------
        for hh in range(h):
            lo = margin + (hh + 1) * wp + 1
            buf_ref[0:cin, lo:lo + w] = x_ref[b, :, hh * w:(hh + 1) * w]

        # ---- conv1 + bias (ones row) + ReLU; input channels [cin, cmid) of the
        #      stacked K are zero weight columns --------------------------------
        fill_im2col()
        h1 = jnp.maximum(
            jnp.dot(w1_ref[...], im_ref[...], preferred_element_type=jnp.float32),
            0.0)
        h1m = h1 * int_ref[...]   # zero the ring: exact zero-padding for conv2

        # ---- bn1 (folded into conv2 weights / bias map) + conv2 --------------
        buf_ref[0:cmid, margin:margin + P] = h1m
        fill_im2col()
        acc2 = jnp.dot(w2_ref[...], im_ref[0:K2, :],
                       preferred_element_type=jnp.float32) + b2map_ref[...]

        # ---- add1 (residual with the saved conv1+ReLU output) + act1 (ReLU) --
        r = jnp.maximum(acc2 + h1m, 0.0)          # reuse live h1m, no reload

        # ---- pool1: 2x2/2 max pool = shifted max (r itself is the (0,0) tap)
        #      + one-hot selection matmul compacting to (cmid, Ho*Wo) ----------
        buf_ref[cmid:2 * cmid, margin:margin + P] = r
        p01 = buf_ref[cmid:2 * cmid, margin + 1: margin + 1 + P]
        p10 = buf_ref[cmid:2 * cmid, margin + wp: margin + wp + P]
        p11 = buf_ref[cmid:2 * cmid, margin + wp + 1: margin + wp + 1 + P]
        pooled_scatter = jnp.maximum(jnp.maximum(r, p01), jnp.maximum(p10, p11))
        pooled = jnp.dot(pooled_scatter, sel_ref[...],
                         preferred_element_type=jnp.float32)

        # ---- smax: channel-wise softmax over the pooled spatial positions ----
        # (approx reciprocal: EUP path, ~1e-3 relative; within test tolerance)
        m = jnp.max(pooled, axis=-1, keepdims=True)
        e = jnp.exp(pooled - m)
        denom = jnp.sum(e, axis=-1, keepdims=True)
        results.append(e * pl.reciprocal(denom, approx=True))

    # Lane-concatenated output block: (cmid, B*Ho*Wo) — one lane-dense store.
    o_ref[...] = results[0] if nb == 1 else jnp.concatenate(results, axis=-1)


# ----------------------------------------------------------------------------
# One-time parameter preparation (hoisted OUT of the per-call forward path)
# ----------------------------------------------------------------------------
def prepare_params(p, H, W):
    Cout1, Cin = p["conv1_w"].shape[:2]
    Cout2, Cmid_in = p["conv2_w"].shape[:2]
    assert Cout1 == Cmid_in == Cout2, "residual add requires matching channels"
    Cmid = Cout1
    assert Cin <= Cmid and Cmid % 8 == 0
    Hp, Wp = H + 2, W + 2
    P = Hp * Wp
    Ho, Wo = H // 2, W // 2

    # conv1: pad input channels up to Cmid (zero weight columns), stack the 9
    # taps along K in (kh, kw, c) order, append the bias as an extra K column
    # (matched by the constant-ones im2col row in the kernel).
    w1_pad = jnp.zeros((Cout1, Cmid, 3, 3), jnp.float32).at[:, :Cin].set(
        p["conv1_w"].astype(jnp.float32))
    w1_taps = jnp.transpose(w1_pad, (0, 2, 3, 1)).reshape(Cout1, 9 * Cmid)
    w1s = jnp.concatenate([w1_taps, p["conv1_b"].reshape(Cout1, 1)], axis=1)

    # Eval-mode BatchNorm folded into conv2:
    #   BN(h) = scale*h + shift  (per channel)
    #   conv2(pad(BN(h))) = conv_{w2*scale}(pad(h)) + [conv2(pad(shift_img)) + b2]
    # The bracket is a constant bias image, computed once here (exact, including
    # the zero-padded border where the shift must NOT be applied).
    scale = p["bn_gamma"] / jnp.sqrt(p["bn_var"] + p["bn_eps"])
    shift = p["bn_beta"] - p["bn_mean"] * scale
    w2f = p["conv2_w"] * scale[None, :, None, None]
    w2s = jnp.transpose(w2f, (0, 2, 3, 1)).reshape(Cout2, 9 * Cmid)
    shift_img = jnp.broadcast_to(shift[None, :, None, None], (1, Cmid, H, W))
    bias_map = jax.lax.conv_general_dilated(
        shift_img, p["conv2_w"], (1, 1), [(1, 1), (1, 1)],
        dimension_numbers=("NCHW", "OIHW", "NCHW"),
        precision=jax.lax.Precision.HIGHEST,
    ) + p["conv2_b"].reshape(1, Cout2, 1, 1)
    bias_flat = jnp.pad(bias_map, ((0, 0), (0, 0), (1, 1), (1, 1))).reshape(Cout2, P)

    # Interior mask: 1 inside the original HxW grid, 0 on the padded ring.
    hi = jnp.arange(Hp)
    wi = jnp.arange(Wp)
    interior = (((hi >= 1) & (hi <= H))[:, None]
                & ((wi >= 1) & (wi <= W))[None, :]).astype(jnp.float32).reshape(1, P)

    # One-hot selection matrix mapping padded-flat position of pooled cell
    # (2ho+1, 2wo+1) to dense output lane ho*Wo+wo (used as an MXU matmul).
    m_idx = jnp.arange(Ho * Wo)
    sel_pos = (2 * (m_idx // Wo) + 1) * Wp + (2 * (m_idx % Wo) + 1)
    sel = (jnp.arange(P)[:, None] == sel_pos[None, :]).astype(jnp.float32)

    return {"w1s": w1s, "w2s": w2s, "bias_flat": bias_flat,
            "interior": interior, "sel": sel}


# ----------------------------------------------------------------------------
# Forward: exact ModelFromJson stack semantics, one pallas_call per batch.
# ----------------------------------------------------------------------------
@jax.jit
def model_forward(x, prep):
    N, Cin, H, W = x.shape
    Cmid = prep["w1s"].shape[0]
    Hp, Wp = H + 2, W + 2
    P = Hp * Wp
    Ho, Wo = H // 2, W // 2
    margin = max(32, Wp + 1)

    # Invariants the fused schedule relies on (review correctness concerns).
    assert margin >= Wp + 1, "margin must cover the largest lane shift (Wp+1)"
    assert H % 2 == 0 and W % 2 == 0, "2x2/2 pooling assumes even H, W"
    assert Cin <= Cmid and Cmid % 8 == 0
    assert prep["sel"].shape == (P, Ho * Wo)
    assert prep["bias_flat"].shape == (Cmid, P)

    # Images per grid step: B>=2 -> lane-dense (>=128) output stores and
    # amortized per-step overhead; keep >=2 parallel steps when N allows so
    # both v7x TensorCores are used (v5e/v6e have 1 TC and don't care).
    B = 1
    for cand in (4, 2):
        if N % cand == 0 and N // cand >= 2:
            B = cand
            break
    S = N // B

    x_flat = x.reshape(N, Cin, H * W)   # contiguous collapse: free bitcast

    kernel = functools.partial(_fused_forward_kernel, nb=B, cin=Cin, cmid=Cmid,
                               h=H, w=W, margin=margin)

    out = pl.pallas_call(
        kernel,
        out_shape=jax.ShapeDtypeStruct((S, Cmid, B * Ho * Wo), jnp.float32),
        grid=(S,),
        in_specs=[
            pl.BlockSpec((B, Cin, H * W), lambda n: (n, 0, 0)),       # x (B images / step)
            pl.BlockSpec((Cmid, 9 * Cmid + 1), lambda n: (0, 0)),     # conv1 stacked taps + bias col
            pl.BlockSpec((Cmid, 9 * Cmid), lambda n: (0, 0)),         # conv2 stacked taps (BN-scaled)
            pl.BlockSpec((Cmid, P), lambda n: (0, 0)),                # conv2 bias map (BN shift folded)
            pl.BlockSpec((1, P), lambda n: (0, 0)),                   # interior mask
            pl.BlockSpec((P, Ho * Wo), lambda n: (0, 0)),             # pool one-hot selection
        ],
        out_specs=pl.BlockSpec((None, Cmid, B * Ho * Wo), lambda n: (n, 0, 0)),
        scratch_shapes=[
            pltpu.VMEM((2 * Cmid, P + 2 * margin), jnp.float32),      # shift buffer (x/h1 | r)
            pltpu.VMEM((9 * Cmid + 1, P), jnp.float32),               # stacked im2col (+ ones row)
        ],
        compiler_params=pltpu.CompilerParams(dimension_semantics=("parallel",)),
    )(x_flat, prep["w1s"], prep["w2s"], prep["bias_flat"], prep["interior"],
      prep["sel"])

    # Undo the per-step lane concatenation: image index = step*B + b.
    out = out.reshape(S, Cmid, B, Ho, Wo)
    out = jnp.transpose(out, (0, 2, 1, 3, 4)).reshape(N, Cmid, Ho, Wo)
    return out


# ----------------------------------------------------------------------------
# In-script deterministic parameters (replaces the JSON file load)
# ----------------------------------------------------------------------------
def init_params(key):
    ks = jax.random.split(key, 8)
    p = {}
    p["conv1_w"] = 0.1 * jax.random.normal(ks[0], (8, 4, 3, 3), jnp.float32)
    p["conv1_b"] = 0.1 * jax.random.normal(ks[1], (8,), jnp.float32)
    p["bn_gamma"] = 1.0 + 0.1 * jax.random.normal(ks[2], (8,), jnp.float32)
    p["bn_beta"] = 0.1 * jax.random.normal(ks[3], (8,), jnp.float32)
    p["bn_mean"] = 0.1 * jax.random.normal(ks[4], (8,), jnp.float32)
    p["bn_var"] = jnp.abs(1.0 + 0.1 * jax.random.normal(ks[5], (8,), jnp.float32))
    p["bn_eps"] = 1e-5
    p["conv2_w"] = 0.1 * jax.random.normal(ks[6], (8, 8, 3, 3), jnp.float32)
    p["conv2_b"] = 0.1 * jax.random.normal(ks[7], (8,), jnp.float32)
    return p


# ----------------------------------------------------------------------------
# Pure-JAX reference (no Pallas) for the correctness check
# ----------------------------------------------------------------------------
def _ref_conv2d(x, w, b, stride, padding, activation):
    out = jax.lax.conv_general_dilated(
        x, w, (stride, stride), [(padding, padding), (padding, padding)],
        dimension_numbers=("NCHW", "OIHW", "NCHW"),
        precision=jax.lax.Precision.HIGHEST,
    ) + b.reshape(1, -1, 1, 1)
    if activation == "relu":
        out = jnp.maximum(out, 0.0)
    elif activation == "sigmoid":
        out = jax.nn.sigmoid(out)
    return out


def ref_forward(x, p):
    h = jnp.pad(x, ((0, 0), (0, 0), (1, 1), (1, 1)))
    c1 = _ref_conv2d(h, p["conv1_w"], p["conv1_b"], 1, 0, "relu")
    h = (c1 - p["bn_mean"].reshape(1, -1, 1, 1)) / jnp.sqrt(
        p["bn_var"].reshape(1, -1, 1, 1) + p["bn_eps"]
    ) * p["bn_gamma"].reshape(1, -1, 1, 1) + p["bn_beta"].reshape(1, -1, 1, 1)
    h = _ref_conv2d(h, p["conv2_w"], p["conv2_b"], 1, 1, "linear")
    h = jnp.maximum(c1 + h, 0.0)
    N, C, H, W = h.shape
    h = h.reshape(N, C, H // 2, 2, W // 2, 2).max(axis=(3, 5))
    h = jax.nn.softmax(h.reshape(N, C, -1), axis=2).reshape(h.shape)
    return h


if __name__ == "__main__":
    key = jax.random.PRNGKey(0)
    kx, kp = jax.random.split(key)
    x = jax.random.normal(kx, (2, 4, 16, 16), jnp.float32)
    params = init_params(kp)

    # One-time prep (hoisted out of the per-call forward path).
    prep = prepare_params(params, 16, 16)

    out = jax.block_until_ready(model_forward(x, prep))
    ref = jax.block_until_ready(ref_forward(x, params))

    assert out.shape == (2, 8, 8, 8), out.shape
    max_err = float(jnp.max(jnp.abs(out - ref)))
    if max_err > 2e-3:
        raise AssertionError(f"Pallas output mismatch vs reference, max_err={max_err}")

    print("KERNEL_OK")
</pallas_src>

<mosaic_0001>
module attributes {stable_mosaic.version = 11 : i64} {
  func.func @_fused_forward_kernel(%arg0: i32, %arg1: memref<1x4x256xf32, #tpu.memory_space<vmem>>, %arg2: memref<8x73xf32, #tpu.memory_space<vmem>>, %arg3: memref<8x72xf32, #tpu.memory_space<vmem>>, %arg4: memref<8x324xf32, #tpu.memory_space<vmem>>, %arg5: memref<1x324xf32, #tpu.memory_space<vmem>>, %arg6: memref<324x64xf32, #tpu.memory_space<vmem>>, %arg7: memref<1x8x64xf32, #tpu.memory_space<vmem>>, %arg8: memref<16x388xf32, #tpu.memory_space<vmem>>, %arg9: memref<73x324xf32, #tpu.memory_space<vmem>>) attributes {dimension_semantics = [#tpu.dimension_semantics<parallel>], iteration_bounds = array<i64: 2>, scalar_prefetch = 0 : i64, scratch_operands = 2 : i64, tpu.core_type = #tpu.core_type<tc>, window_params = [{transform_indices = @transform_0, window_bounds = array<i64: 1, 4, 256>}, {pipeline_mode = #tpu.pipeline_mode<synchronous>, transform_indices = @transform_1, window_bounds = array<i64: 8, 73>}, {pipeline_mode = #tpu.pipeline_mode<synchronous>, transform_indices = @transform_2, window_bounds = array<i64: 8, 72>}, {pipeline_mode = #tpu.pipeline_mode<synchronous>, transform_indices = @transform_3, window_bounds = array<i64: 8, 324>}, {pipeline_mode = #tpu.pipeline_mode<synchronous>, transform_indices = @transform_4, window_bounds = array<i64: 1, 324>}, {pipeline_mode = #tpu.pipeline_mode<synchronous>, transform_indices = @transform_5, window_bounds = array<i64: 324, 64>}, {transform_indices = @transform_6, window_bounds = array<i64: 1, 8, 64>}]} {
    %cst = arith.constant 0.000000e+00 : f32
    %0 = vector.broadcast %cst : f32 to vector<16x388xf32>
    %c0 = arith.constant 0 : index
    %c0_0 = arith.constant 0 : index
    %1 = vector.load %arg8[%c0, %c0_0] : memref<16x388xf32, #tpu.memory_space<vmem>>, vector<16x388xf32>
    tpu.vector_store %arg8[%c0, %c0_0], %0 {strides = array<i32>} : memref<16x388xf32, #tpu.memory_space<vmem>>, vector<16x388xf32>,
    %cst_1 = arith.constant 1.000000e+00 : f32
    %2 = vector.broadcast %cst_1 : f32 to vector<1x324xf32>
    %c72 = arith.constant 72 : index
    %c0_2 = arith.constant 0 : index
    %3 = vector.load %arg9[%c72, %c0_2] : memref<73x324xf32, #tpu.memory_space<vmem>>, vector<1x324xf32>
    tpu.vector_store %arg9[%c72, %c0_2], %2 {strides = array<i32>} : memref<73x324xf32, #tpu.memory_space<vmem>>, vector<1x324xf32>,
    %c0_3 = arith.constant 0 : index
    %c0_4 = arith.constant 0 : index
    %c0_5 = arith.constant 0 : index
    %4 = vector.load %arg1[%c0_3, %c0_4, %c0_5] : memref<1x4x256xf32, #tpu.memory_space<vmem>>, vector<1x4x16xf32>
    %5 = vector.shape_cast %4 : vector<1x4x16xf32> to vector<4x16xf32>
    %c0_6 = arith.constant 0 : index
    %c51 = arith.constant 51 : index
    %6 = vector.load %arg8[%c0_6, %c51] : memref<16x388xf32, #tpu.memory_space<vmem>>, vector<4x16xf32>
    tpu.vector_store %arg8[%c0_6, %c51], %5 {strides = array<i32>} : memref<16x388xf32, #tpu.memory_space<vmem>>, vector<4x16xf32>,
    %c0_7 = arith.constant 0 : index
    %c0_8 = arith.constant 0 : index
    %c16 = arith.constant 16 : index
    %7 = vector.load %arg1[%c0_7, %c0_8, %c16] : memref<1x4x256xf32, #tpu.memory_space<vmem>>, vector<1x4x16xf32>
    %8 = vector.shape_cast %7 : vector<1x4x16xf32> to vector<4x16xf32>
    %c0_9 = arith.constant 0 : index
    %c69 = arith.constant 69 : index
    %9 = vector.load %arg8[%c0_9, %c69] : memref<16x388xf32, #tpu.memory_space<vmem>>, vector<4x16xf32>
    tpu.vector_store %arg8[%c0_9, %c69], %8 {strides = array<i32>} : memref<16x388xf32, #tpu.memory_space<vmem>>, vector<4x16xf32>,
    %c0_10 = arith.constant 0 : index
    %c0_11 = arith.constant 0 : index
    %c32 = arith.constant 32 : index
    %10 = vector.load %arg1[%c0_10, %c0_11, %c32] : memref<1x4x256xf32, #tpu.memory_space<vmem>>, vector<1x4x16xf32>
    %11 = vector.shape_cast %10 : vector<1x4x16xf32> to vector<4x16xf32>
    %c0_12 = arith.constant 0 : index
    %c87 = arith.constant 87 : index
    %12 = vector.load %arg8[%c0_12, %c87] : memref<16x388xf32, #tpu.memory_space<vmem>>, vector<4x16xf32>
    tpu.vector_store %arg8[%c0_12, %c87], %11 {strides = array<i32>} : memref<16x388xf32, #tpu.memory_space<vmem>>, vector<4x16xf32>,
    %c0_13 = arith.constant 0 : index
    %c0_14 = arith.constant 0 : index
    %c48 = arith.constant 48 : index
    %13 = vector.load %arg1[%c0_13, %c0_14, %c48] : memref<1x4x256xf32, #tpu.memory_space<vmem>>, vector<1x4x16xf32>
    %14 = vector.shape_cast %13 : vector<1x4x16xf32> to vector<4x16xf32>
    %c0_15 = arith.constant 0 : index
    %c105 = arith.constant 105 : index
    %15 = vector.load %arg8[%c0_15, %c105] : memref<16x388xf32, #tpu.memory_space<vmem>>, vector<4x16xf32>
    tpu.vector_store %arg8[%c0_15, %c105], %14 {strides = array<i32>} : memref<16x388xf32, #tpu.memory_space<vmem>>, vector<4x16xf32>,
    %c0_16 = arith.constant 0 : index
    %c0_17 = arith.constant 0 : index
    %c64 = arith.constant 64 : index
    %16 = vector.load %arg1[%c0_16, %c0_17, %c64] : memref<1x4x256xf32, #tpu.memory_space<vmem>>, vector<1x4x16xf32>
    %17 = vector.shape_cast %16 : vector<1x4x16xf32> to vector<4x16xf32>
    %c0_18 = arith.constant 0 : index
    %c123 = arith.constant 123 : index
    %18 = vector.load %arg8[%c0_18, %c123] : memref<16x388xf32, #tpu.memory_space<vmem>>, vector<4x16xf32>
    tpu.vector_store %arg8[%c0_18, %c123], %17 {strides = array<i32>} : memref<16x388xf32, #tpu.memory_space<vmem>>, vector<4x16xf32>,
    %c0_19 = arith.constant 0 : index
    %c0_20 = arith.constant 0 : index
    %c80 = arith.constant 80 : index
    %19 = vector.load %arg1[%c0_19, %c0_20, %c80] : memref<1x4x256xf32, #tpu.memory_space<vmem>>, vector<1x4x16xf32>
    %20 = vector.shape_cast %19 : vector<1x4x16xf32> to vector<4x16xf32>
    %c0_21 = arith.constant 0 : index
    %c141 = arith.constant 141 : index
    %21 = vector.load %arg8[%c0_21, %c141] : memref<16x388xf32, #tpu.memory_space<vmem>>, vector<4x16xf32>
    tpu.vector_store %arg8[%c0_21, %c141], %20 {strides = array<i32>} : memref<16x388xf32, #tpu.memory_space<vmem>>, vector<4x16xf32>,
    %c0_22 = arith.constant 0 : index
    %c0_23 = arith.constant 0 : index
    %c96 = arith.constant 96 : index
    %22 = vector.load %arg1[%c0_22, %c0_23, %c96] : memref<1x4x256xf32, #tpu.memory_space<vmem>>, vector<1x4x16xf32>
    %23 = vector.shape_cast %22 : vector<1x4x16xf32> to vector<4x16xf32>
    %c0_24 = arith.constant 0 : index
    %c159 = arith.constant 159 : index
    %24 = vector.load %arg8[%c0_24, %c159] : memref<16x388xf32, #tpu.memory_space<vmem>>, vector<4x16xf32>
    tpu.vector_store %arg8[%c0_24, %c159], %23 {strides = array<i32>} : memref<16x388xf32, #tpu.memory_space<vmem>>, vector<4x16xf32>,
    %c0_25 = arith.constant 0 : index
    %c0_26 = arith.constant 0 : index
    %c112 = arith.constant 112 : index
    %25 = vector.load %arg1[%c0_25, %c0_26, %c112] : memref<1x4x256xf32, #tpu.memory_space<vmem>>, vector<1x4x16xf32>
    %26 = vector.shape_cast %25 : vector<1x4x16xf32> to vector<4x16xf32>
    %c0_27 = arith.constant 0 : index
    %c177 = arith.constant 177 : index
    %27 = vector.load %arg8[%c0_27, %c177] : memref<16x388xf32, #tpu.memory_space<vmem>>, vector<4x16xf32>
    tpu.vector_store %arg8[%c0_27, %c177], %26 {strides = array<i32>} : memref<16x388xf32, #tpu.memory_space<vmem>>, vector<4x16xf32>,
    %c0_28 = arith.constant 0 : index
    %c0_29 = arith.constant 0 : index
    %c128 = arith.constant 128 : index
    %28 = vector.load %arg1[%c0_28, %c0_29, %c128] : memref<1x4x256xf32, #tpu.memory_space<vmem>>, vector<1x4x16xf32>
    %29 = vector.shape_cast %28 : vector<1x4x16xf32> to vector<4x16xf32>
    %c0_30 = arith.constant 0 : index
    %c195 = arith.constant 195 : index
    %30 = vector.load %arg8[%c0_30, %c195] : memref<16x388xf32, #tpu.memory_space<vmem>>, vector<4x16xf32>
    tpu.vector_store %arg8[%c0_30, %c195], %29 {strides = array<i32>} : memref<16x388xf32, #tpu.memory_space<vmem>>, vector<4x16xf32>,
    %c0_31 = arith.constant 0 : index
    %c0_32 = arith.constant 0 : index
    %c144 = arith.constant 144 : index
    %31 = vector.load %arg1[%c0_31, %c0_32, %c144] : memref<1x4x256xf32, #tpu.memory_space<vmem>>, vector<1x4x16xf32>
    %32 = vector.shape_cast %31 : vector<1x4x16xf32> to vector<4x16xf32>
    %c0_33 = arith.constant 0 : index
    %c213 = arith.constant 213 : index
    %33 = vector.load %arg8[%c0_33, %c213] : memref<16x388xf32, #tpu.memory_space<vmem>>, vector<4x16xf32>
    tpu.vector_store %arg8[%c0_33, %c213], %32 {strides = array<i32>} : memref<16x388xf32, #tpu.memory_space<vmem>>, vector<4x16xf32>,
    %c0_34 = arith.constant 0 : index
    %c0_35 = arith.constant 0 : index
    %c160 = arith.constant 160 : index
    %34 = vector.load %arg1[%c0_34, %c0_35, %c160] : memref<1x4x256xf32, #tpu.memory_space<vmem>>, vector<1x4x16xf32>
    %35 = vector.shape_cast %34 : vector<1x4x16xf32> to vector<4x16xf32>
    %c0_36 = arith.constant 0 : index
    %c231 = arith.constant 231 : index
    %36 = vector.load %arg8[%c0_36, %c231] : memref<16x388xf32, #tpu.memory_space<vmem>>, vector<4x16xf32>
    tpu.vector_store %arg8[%c0_36, %c231], %35 {strides = array<i32>} : memref<16x388xf32, #tpu.memory_space<vmem>>, vector<4x16xf32>,
    %c0_37 = arith.constant 0 : index
    %c0_38 = arith.constant 0 : index
    %c176 = arith.constant 176 : index
    %37 = vector.load %arg1[%c0_37, %c0_38, %c176] : memref<1x4x256xf32, #tpu.memory_space<vmem>>, vector<1x4x16xf32>
    %38 = vector.shape_cast %37 : vector<1x4x16xf32> to vector<4x16xf32>
    %c0_39 = arith.constant 0 : index
    %c249 = arith.constant 249 : index
    %39 = vector.load %arg8[%c0_39, %c249] : memref<16x388xf32, #tpu.memory_space<vmem>>, vector<4x16xf32>
    tpu.vector_store %arg8[%c0_39, %c249], %38 {strides = array<i32>} : memref<16x388xf32, #tpu.memory_space<vmem>>, vector<4x16xf32>,
    %c0_40 = arith.constant 0 : index
    %c0_41 = arith.constant 0 : index
    %c192 = arith.constant 192 : index
    %40 = vector.load %arg1[%c0_40, %c0_41, %c192] : memref<1x4x256xf32, #tpu.memory_space<vmem>>, vector<1x4x16xf32>
    %41 = vector.shape_cast %40 : vector<1x4x16xf32> to vector<4x16xf32>
    %c0_42 = arith.constant 0 : index
    %c267 = arith.constant 267 : index
    %42 = vector.load %arg8[%c0_42, %c267] : memref<16x388xf32, #tpu.memory_space<vmem>>, vector<4x16xf32>
    tpu.vector_store %arg8[%c0_42, %c267], %41 {strides = array<i32>} : memref<16x388xf32, #tpu.memory_space<vmem>>, vector<4x16xf32>,
    %c0_43 = arith.constant 0 : index
    %c0_44 = arith.constant 0 : index
    %c208 = arith.constant 208 : index
    %43 = vector.load %arg1[%c0_43, %c0_44, %c208] : memref<1x4x256xf32, #tpu.memory_space<vmem>>, vector<1x4x16xf32>
    %44 = vector.shape_cast %43 : vector<1x4x16xf32> to vector<4x16xf32>
    %c0_45 = arith.constant 0 : index
    %c285 = arith.constant 285 : index
    %45 = vector.load %arg8[%c0_45, %c285] : memref<16x388xf32, #tpu.memory_space<vmem>>, vector<4x16xf32>
    tpu.vector_store %arg8[%c0_45, %c285], %44 {strides = array<i32>} : memref<16x388xf32, #tpu.memory_space<vmem>>, vector<4x16xf32>,
    %c0_46 = arith.constant 0 : index
    %c0_47 = arith.constant 0 : index
    %c224 = arith.constant 224 : index
    %46 = vector.load %arg1[%c0_46, %c0_47, %c224] : memref<1x4x256xf32, #tpu.memory_space<vmem>>, vector<1x4x16xf32>
    %47 = vector.shape_cast %46 : vector<1x4x16xf32> to vector<4x16xf32>
    %c0_48 = arith.constant 0 : index
    %c303 = arith.constant 303 : index
    %48 = vector.load %arg8[%c0_48, %c303] : memref<16x388xf32, #tpu.memory_space<vmem>>, vector<4x16xf32>
    tpu.vector_store %arg8[%c0_48, %c303], %47 {strides = array<i32>} : memref<16x388xf32, #tpu.memory_space<vmem>>, vector<4x16xf32>,
    %c0_49 = arith.constant 0 : index
    %c0_50 = arith.constant 0 : index
    %c240 = arith.constant 240 : index
    %49 = vector.load %arg1[%c0_49, %c0_50, %c240] : memref<1x4x256xf32, #tpu.memory_space<vmem>>, vector<1x4x16xf32>
    %50 = vector.shape_cast %49 : vector<1x4x16xf32> to vector<4x16xf32>
    %c0_51 = arith.constant 0 : index
    %c321 = arith.constant 321 : index
    %51 = vector.load %arg8[%c0_51, %c321] : memref<16x388xf32, #tpu.memory_space<vmem>>, vector<4x16xf32>
    tpu.vector_store %arg8[%c0_51, %c321], %50 {strides = array<i32>} : memref<16x388xf32, #tpu.memory_space<vmem>>, vector<4x16xf32>,
    %c0_52 = arith.constant 0 : index
    %c13 = arith.constant 13 : index
    %52 = vector.load %arg8[%c0_52, %c13] : memref<16x388xf32, #tpu.memory_space<vmem>>, vector<8x324xf32>
    %c0_53 = arith.constant 0 : index
    %c0_54 = arith.constant 0 : index
    %53 = vector.load %arg9[%c0_53, %c0_54] : memref<73x324xf32, #tpu.memory_space<vmem>>, vector<8x324xf32>
    tpu.vector_store %arg9[%c0_53, %c0_54], %52 {strides = array<i32>} : memref<73x324xf32, #tpu.memory_space<vmem>>, vector<8x324xf32>,
    %c0_55 = arith.constant 0 : index
    %c14 = arith.constant 14 : index
    %54 = vector.load %arg8[%c0_55, %c14] : memref<16x388xf32, #tpu.memory_space<vmem>>, vector<8x324xf32>
    %c8 = arith.constant 8 : index
    %c0_56 = arith.constant 0 : index
    %55 = vector.load %arg9[%c8, %c0_56] : memref<73x324xf32, #tpu.memory_space<vmem>>, vector<8x324xf32>
    tpu.vector_store %arg9[%c8, %c0_56], %54 {strides = array<i32>} : memref<73x324xf32, #tpu.memory_space<vmem>>, vector<8x324xf32>,
    %c0_57 = arith.constant 0 : index
    %c15 = arith.constant 15 : index
    %56 = vector.load %arg8[%c0_57, %c15] : memref<16x388xf32, #tpu.memory_space<vmem>>, vector<8x324xf32>
    %c16_58 = arith.constant 16 : index
    %c0_59 = arith.constant 0 : index
    %57 = vector.load %arg9[%c16_58, %c0_59] : memref<73x324xf32, #tpu.memory_space<vmem>>, vector<8x324xf32>
    tpu.vector_store %arg9[%c16_58, %c0_59], %56 {strides = array<i32>} : memref<73x324xf32, #tpu.memory_space<vmem>>, vector<8x324xf32>,
    %c0_60 = arith.constant 0 : index
    %c31 = arith.constant 31 : index
    %58 = vector.load %arg8[%c0_60, %c31] : memref<16x388xf32, #tpu.memory_space<vmem>>, vector<8x324xf32>
    %c24 = arith.constant 24 : index
    %c0_61 = arith.constant 0 : index
    %59 = vector.load %arg9[%c24, %c0_61] : memref<73x324xf32, #tpu.memory_space<vmem>>, vector<8x324xf32>
    tpu.vector_store %arg9[%c24, %c0_61], %58 {strides = array<i32>} : memref<73x324xf32, #tpu.memory_space<vmem>>, vector<8x324xf32>,
    %c0_62 = arith.constant 0 : index
    %c32_63 = arith.constant 32 : index
    %60 = vector.load %arg8[%c0_62, %c32_63] : memref<16x388xf32, #tpu.memory_space<vmem>>, vector<8x324xf32>
    %c32_64 = arith.constant 32 : index
    %c0_65 = arith.constant 0 : index
    %61 = vector.load %arg9[%c32_64, %c0_65] : memref<73x324xf32, #tpu.memory_space<vmem>>, vector<8x324xf32>
    tpu.vector_store %arg9[%c32_64, %c0_65], %60 {strides = array<i32>} : memref<73x324xf32, #tpu.memory_space<vmem>>, vector<8x324xf32>,
    %c0_66 = arith.constant 0 : index
    %c33 = arith.constant 33 : index
    %62 = vector.load %arg8[%c0_66, %c33] : memref<16x388xf32, #tpu.memory_space<vmem>>, vector<8x324xf32>
    %c40 = arith.constant 40 : index
    %c0_67 = arith.constant 0 : index
    %63 = vector.load %arg9[%c40, %c0_67] : memref<73x324xf32, #tpu.memory_space<vmem>>, vector<8x324xf32>
    tpu.vector_store %arg9[%c40, %c0_67], %62 {strides = array<i32>} : memref<73x324xf32, #tpu.memory_space<vmem>>, vector<8x324xf32>,
    %c0_68 = arith.constant 0 : index
    %c49 = arith.constant 49 : index
    %64 = vector.load %arg8[%c0_68, %c49] : memref<16x388xf32, #tpu.memory_space<vmem>>, vector<8x324xf32>
    %c48_69 = arith.constant 48 : index
    %c0_70 = arith.constant 0 : index
    %65 = vector.load %arg9[%c48_69, %c0_70] : memref<73x324xf32, #tpu.memory_space<vmem>>, vector<8x324xf32>
    tpu.vector_store %arg9[%c48_69, %c0_70], %64 {strides = array<i32>} : memref<73x324xf32, #tpu.memory_space<vmem>>, vector<8x324xf32>,
    %c0_71 = arith.constant 0 : index
    %c50 = arith.constant 50 : index
    %66 = vector.load %arg8[%c0_71, %c50] : memref<16x388xf32, #tpu.memory_space<vmem>>, vector<8x324xf32>
    %c56 = arith.constant 56 : index
    %c0_72 = arith.constant 0 : index
    %67 = vector.load %arg9[%c56, %c0_72] : memref<73x324xf32, #tpu.memory_space<vmem>>, vector<8x324xf32>
    tpu.vector_store %arg9[%c56, %c0_72], %66 {strides = array<i32>} : memref<73x324xf32, #tpu.memory_space<vmem>>, vector<8x324xf32>,
    %c0_73 = arith.constant 0 : index
    %c51_74 = arith.constant 51 : index
    %68 = vector.load %arg8[%c0_73, %c51_74] : memref<16x388xf32, #tpu.memory_space<vmem>>, vector<8x324xf32>
    %c64_75 = arith.constant 64 : index
    %c0_76 = arith.constant 0 : index
    %69 = vector.load %arg9[%c64_75, %c0_76] : memref<73x324xf32, #tpu.memory_space<vmem>>, vector<8x324xf32>
    tpu.vector_store %arg9[%c64_75, %c0_76], %68 {strides = array<i32>} : memref<73x324xf32, #tpu.memory_space<vmem>>, vector<8x324xf32>,
    %c0_77 = arith.constant 0 : index
    %c0_78 = arith.constant 0 : index
    %70 = vector.load %arg2[%c0_77, %c0_78] : memref<8x73xf32, #tpu.memory_space<vmem>>, vector<8x73xf32>
    %c0_79 = arith.constant 0 : index
    %c0_80 = arith.constant 0 : index
    %71 = vector.load %arg9[%c0_79, %c0_80] : memref<73x324xf32, #tpu.memory_space<vmem>>, vector<73x324xf32>
    %cst_81 = arith.constant dense<0.000000e+00> : vector<8x324xf32>
    %72 = tpu.matmul %70, %71, %cst_81 {dimension_numbers = #tpu.dot_dimension_numbers<[1], [0], [0], [1], [0, 0, 1, 1], [], []>} : vector<8x73xf32>, vector<73x324xf32>, vector<8x324xf32> -> vector<8x324xf32>
    %cst_82 = arith.constant 0.000000e+00 : f32
    %73 = vector.broadcast %cst_82 : f32 to vector<8x324xf32>
    %74 = arith.maximumf %72, %73 : vector<8x324xf32>
    %c0_83 = arith.constant 0 : index
    %c0_84 = arith.constant 0 : index
    %75 = vector.load %arg5[%c0_83, %c0_84] : memref<1x324xf32, #tpu.memory_space<vmem>>, vector<1x324xf32>
    %76 = vector.broadcast %75 : vector<1x324xf32> to vector<8x324xf32>
    %77 = arith.mulf %74, %76 : vector<8x324xf32>
    %c0_85 = arith.constant 0 : index
    %c32_86 = arith.constant 32 : index
    %78 = vector.load %arg8[%c0_85, %c32_86] : memref<16x388xf32, #tpu.memory_space<vmem>>, vector<8x324xf32>
    tpu.vector_store %arg8[%c0_85, %c32_86], %77 {strides = array<i32>} : memref<16x388xf32, #tpu.memory_space<vmem>>, vector<8x324xf32>,
    %c0_87 = arith.constant 0 : index
    %c13_88 = arith.constant 13 : index
    %79 = vector.load %arg8[%c0_87, %c13_88] : memref<16x388xf32, #tpu.memory_space<vmem>>, vector<8x324xf32>
    %c0_89 = arith.constant 0 : index
    %c0_90 = arith.constant 0 : index
    %80 = vector.load %arg9[%c0_89, %c0_90] : memref<73x324xf32, #tpu.memory_space<vmem>>, vector<8x324xf32>
    tpu.vector_store %arg9[%c0_89, %c0_90], %79 {strides = array<i32>} : memref<73x324xf32, #tpu.memory_space<vmem>>, vector<8x324xf32>,
    %c0_91 = arith.constant 0 : index
    %c14_92 = arith.constant 14 : index
    %81 = vector.load %arg8[%c0_91, %c14_92] : memref<16x388xf32, #tpu.memory_space<vmem>>, vector<8x324xf32>
    %c8_93 = arith.constant 8 : index
    %c0_94 = arith.constant 0 : index
    %82 = vector.load %arg9[%c8_93, %c0_94] : memref<73x324xf32, #tpu.memory_space<vmem>>, vector<8x324xf32>
    tpu.vector_store %arg9[%c8_93, %c0_94], %81 {strides = array<i32>} : memref<73x324xf32, #tpu.memory_space<vmem>>, vector<8x324xf32>,
    %c0_95 = arith.constant 0 : index
    %c15_96 = arith.constant 15 : index
    %83 = vector.load %arg8[%c0_95, %c15_96] : memref<16x388xf32, #tpu.memory_space<vmem>>, vector<8x324xf32>
    %c16_97 = arith.constant 16 : index
    %c0_98 = arith.constant 0 : index
    %84 = vector.load %arg9[%c16_97, %c0_98] : memref<73x324xf32, #tpu.memory_space<vmem>>, vector<8x324xf32>
    tpu.vector_store %arg9[%c16_97, %c0_98], %83 {strides = array<i32>} : memref<73x324xf32, #tpu.memory_space<vmem>>, vector<8x324xf32>,
    %c0_99 = arith.constant 0 : index
    %c31_100 = arith.constant 31 : index
    %85 = vector.load %arg8[%c0_99, %c31_100] : memref<16x388xf32, #tpu.memory_space<vmem>>, vector<8x324xf32>
    %c24_101 = arith.constant 24 : index
    %c0_102 = arith.constant 0 : index
    %86 = vector.load %arg9[%c24_101, %c0_102] : memref<73x324xf32, #tpu.memory_space<vmem>>, vector<8x324xf32>
    tpu.vector_store %arg9[%c24_101, %c0_102], %85 {strides = array<i32>} : memref<73x324xf32, #tpu.memory_space<vmem>>, vector<8x324xf32>,
    %c0_103 = arith.constant 0 : index
    %c32_104 = arith.constant 32 : index
    %87 = vector.load %arg8[%c0_103, %c32_104] : memref<16x388xf32, #tpu.memory_space<vmem>>, vector<8x324xf32>
    %c32_105 = arith.constant 32 : index
    %c0_106 = arith.constant 0 : index
    %88 = vector.load %arg9[%c32_105, %c0_106] : memref<73x324xf32, #tpu.memory_space<vmem>>, vector<8x324xf32>
    tpu.vector_store %arg9[%c32_105, %c0_106], %87 {strides = array<i32>} : memref<73x324xf32, #tpu.memory_space<vmem>>, vector<8x324xf32>,
    %c0_107 = arith.constant 0 : index
    %c33_108 = arith.constant 33 : index
    %89 = vector.load %arg8[%c0_107, %c33_108] : memref<16x388xf32, #tpu.memory_space<vmem>>, vector<8x324xf32>
    %c40_109 = arith.constant 40 : index
    %c0_110 = arith.constant 0 : index
    %90 = vector.load %arg9[%c40_109, %c0_110] : memref<73x324xf32, #tpu.memory_space<vmem>>, vector<8x324xf32>
    tpu.vector_store %arg9[%c40_109, %c0_110], %89 {strides = array<i32>} : memref<73x324xf32, #tpu.memory_space<vmem>>, vector<8x324xf32>,
    %c0_111 = arith.constant 0 : index
    %c49_112 = arith.constant 49 : index
    %91 = vector.load %arg8[%c0_111, %c49_112] : memref<16x388xf32, #tpu.memory_space<vmem>>, vector<8x324xf32>
    %c48_113 = arith.constant 48 : index
    %c0_114 = arith.constant 0 : index
    %92 = vector.load %arg9[%c48_113, %c0_114] : memref<73x324xf32, #tpu.memory_space<vmem>>, vector<8x324xf32>
    tpu.vector_store %arg9[%c48_113, %c0_114], %91 {strides = array<i32>} : memref<73x324xf32, #tpu.memory_space<vmem>>, vector<8x324xf32>,
    %c0_115 = arith.constant 0 : index
    %c50_116 = arith.constant 50 : index
    %93 = vector.load %arg8[%c0_115, %c50_116] : memref<16x388xf32, #tpu.memory_space<vmem>>, vector<8x324xf32>
    %c56_117 = arith.constant 56 : index
    %c0_118 = arith.constant 0 : index
    %94 = vector.load %arg9[%c56_117, %c0_118] : memref<73x324xf32, #tpu.memory_space<vmem>>, vector<8x324xf32>
    tpu.vector_store %arg9[%c56_117, %c0_118], %93 {strides = array<i32>} : memref<73x324xf32, #tpu.memory_space<vmem>>, vector<8x324xf32>,
    %c0_119 = arith.constant 0 : index
    %c51_120 = arith.constant 51 : index
    %95 = vector.load %arg8[%c0_119, %c51_120] : memref<16x388xf32, #tpu.memory_space<vmem>>, vector<8x324xf32>
    %c64_121 = arith.constant 64 : index
    %c0_122 = arith.constant 0 : index
    %96 = vector.load %arg9[%c64_121, %c0_122] : memref<73x324xf32, #tpu.memory_space<vmem>>, vector<8x324xf32>
    tpu.vector_store %arg9[%c64_121, %c0_122], %95 {strides = array<i32>} : memref<73x324xf32, #tpu.memory_space<vmem>>, vector<8x324xf32>,
    %c0_123 = arith.constant 0 : index
    %c0_124 = arith.constant 0 : index
    %97 = vector.load %arg3[%c0_123, %c0_124] : memref<8x72xf32, #tpu.memory_space<vmem>>, vector<8x72xf32>
    %c0_125 = arith.constant 0 : index
    %c0_126 = arith.constant 0 : index
    %98 = vector.load %arg9[%c0_125, %c0_126] : memref<73x324xf32, #tpu.memory_space<vmem>>, vector<72x324xf32>
    %cst_127 = arith.constant dense<0.000000e+00> : vector<8x324xf32>
    %99 = tpu.matmul %97, %98, %cst_127 {dimension_numbers = #tpu.dot_dimension_numbers<[1], [0], [0], [1], [0, 0, 1, 1], [], []>} : vector<8x72xf32>, vector<72x324xf32>, vector<8x324xf32> -> vector<8x324xf32>
    %c0_128 = arith.constant 0 : index
    %c0_129 = arith.constant 0 : index
    %100 = vector.load %arg4[%c0_128, %c0_129] : memref<8x324xf32, #tpu.memory_space<vmem>>, vector<8x324xf32>
    %101 = arith.addf %99, %100 : vector<8x324xf32>
    %102 = arith.addf %101, %77 : vector<8x324xf32>
    %cst_130 = arith.constant 0.000000e+00 : f32
    %103 = vector.broadcast %cst_130 : f32 to vector<8x324xf32>
    %104 = arith.maximumf %102, %103 : vector<8x324xf32>
    %c8_131 = arith.constant 8 : index
    %c32_132 = arith.constant 32 : index
    %105 = vector.load %arg8[%c8_131, %c32_132] : memref<16x388xf32, #tpu.memory_space<vmem>>, vector<8x324xf32>
    tpu.vector_store %arg8[%c8_131, %c32_132], %104 {strides = array<i32>} : memref<16x388xf32, #tpu.memory_space<vmem>>, vector<8x324xf32>,
    %c8_133 = arith.constant 8 : index
    %c33_134 = arith.constant 33 : index
    %106 = vector.load %arg8[%c8_133, %c33_134] : memref<16x388xf32, #tpu.memory_space<vmem>>, vector<8x324xf32>
    %c8_135 = arith.constant 8 : index
    %c50_136 = arith.constant 50 : index
    %107 = vector.load %arg8[%c8_135, %c50_136] : memref<16x388xf32, #tpu.memory_space<vmem>>, vector<8x324xf32>
    %c8_137 = arith.constant 8 : index
    %c51_138 = arith.constant 51 : index
    %108 = vector.load %arg8[%c8_137, %c51_138] : memref<16x388xf32, #tpu.memory_space<vmem>>, vector<8x324xf32>
    %109 = arith.maximumf %104, %106 : vector<8x324xf32>
    %110 = arith.maximumf %107, %108 : vector<8x324xf32>
    %111 = arith.maximumf %109, %110 : vector<8x324xf32>
    %c0_139 = arith.constant 0 : index
    %c0_140 = arith.constant 0 : index
    %112 = vector.load %arg6[%c0_139, %c0_140] : memref<324x64xf32, #tpu.memory_space<vmem>>, vector<324x64xf32>
    %cst_141 = arith.constant dense<0.000000e+00> : vector<8x64xf32>
    %113 = tpu.matmul %111, %112, %cst_141 {dimension_numbers = #tpu.dot_dimension_numbers<[1], [0], [0], [1], [0, 0, 1, 1], [], []>} : vector<8x324xf32>, vector<324x64xf32>, vector<8x64xf32> -> vector<8x64xf32>
    %cst_142 = arith.constant dense<0xFF800000> : vector<8xf32>
    %114 = vector.multi_reduction <maximumf>, %113, %cst_142 [1] : vector<8x64xf32> to vector<8xf32>
    %115 = vector.shape_cast %114 : vector<8xf32> to vector<8x1xf32>
    %116 = vector.broadcast %115 : vector<8x1xf32> to vector<8x64xf32>
    %117 = arith.subf %113, %116 : vector<8x64xf32>
    %118 = math.exp %117 : vector<8x64xf32>
    %cst_143 = arith.constant dense<0.000000e+00> : vector<8xf32>
    %119 = vector.multi_reduction <add>, %118, %cst_143 [1] : vector<8x64xf32> to vector<8xf32>
    %120 = vector.shape_cast %119 : vector<8xf32> to vector<8x1xf32>
    %121 = tpu.reciprocal %120 {approx = true} : vector<8x1xf32> -> vector<8x1xf32>
    %122 = vector.broadcast %121 : vector<8x1xf32> to vector<8x64xf32>
    %123 = arith.mulf %118, %122 : vector<8x64xf32>
    %c0_144 = arith.constant 0 : index
    %c0_145 = arith.constant 0 : index
    %c0_146 = arith.constant 0 : index
    %124 = vector.load %arg7[%c0_144, %c0_145, %c0_146] : memref<1x8x64xf32, #tpu.memory_space<vmem>>, vector<1x8x64xf32>
    %125 = vector.shape_cast %124 : vector<1x8x64xf32> to vector<8x64xf32>
    %126 = vector.shape_cast %123 : vector<8x64xf32> to vector<1x8x64xf32>
    tpu.vector_store %arg7[%c0_144, %c0_145, %c0_146], %126 {strides = array<i32>} : memref<1x8x64xf32, #tpu.memory_space<vmem>>, vector<1x8x64xf32>,
    return
  }
  func.func @transform_0(%arg0: i32) -> (i32, i32, i32) {
    %c0_i32 = arith.constant 0 : i32
    %c0_i32_0 = arith.constant 0 : i32
    %c0_i32_1 = arith.constant 0 : i32
    return %arg0, %c0_i32, %c0_i32_0 : i32, i32, i32
  }
  func.func @transform_1(%arg0: i32) -> (i32, i32) {
    %c0_i32 = arith.constant 0 : i32
    %c0_i32_0 = arith.constant 0 : i32
    %c0_i32_1 = arith.constant 0 : i32
    return %c0_i32, %c0_i32_0 : i32, i32
  }
  func.func @transform_2(%arg0: i32) -> (i32, i32) {
    %c0_i32 = arith.constant 0 : i32
    %c0_i32_0 = arith.constant 0 : i32
    %c0_i32_1 = arith.constant 0 : i32
    return %c0_i32, %c0_i32_0 : i32, i32
  }
  func.func @transform_3(%arg0: i32) -> (i32, i32) {
    %c0_i32 = arith.constant 0 : i32
    %c0_i32_0 = arith.constant 0 : i32
    %c0_i32_1 = arith.constant 0 : i32
    return %c0_i32, %c0_i32_0 : i32, i32
  }
  func.func @transform_4(%arg0: i32) -> (i32, i32) {
    %c0_i32 = arith.constant 0 : i32
    %c0_i32_0 = arith.constant 0 : i32
    %c0_i32_1 = arith.constant 0 : i32
    return %c0_i32, %c0_i32_0 : i32, i32
  }
  func.func @transform_5(%arg0: i32) -> (i32, i32) {
    %c0_i32 = arith.constant 0 : i32
    %c0_i32_0 = arith.constant 0 : i32
    %c0_i32_1 = arith.constant 0 : i32
    return %c0_i32, %c0_i32_0 : i32, i32
  }
  func.func @transform_6(%arg0: i32) -> (i32, i32, i32) {
    %c0_i32 = arith.constant 0 : i32
    %c0_i32_0 = arith.constant 0 : i32
    %c0_i32_1 = arith.constant 0 : i32
    return %arg0, %c0_i32, %c0_i32_0 : i32, i32, i32
  }
}

</mosaic_0001>

<llo_original>
// kernel: model_forward.1
$region0: #{model_forward.1}
  #allocation0 [shape = 'u32[]', space=smem, size = 0x4, offset = 0x4, fixed_abs, tag = 'smem constant byte address 0x4 - core index']
  #allocation1 [shape = 'u32[144,128]{1,0:T(1,128)}', space=vmem, size = 0x12000, scoped, tag = 'internal scratch']
  #allocation2 [shape = 'f32[16,388]{1,0:T(8,128)}', space=vmem, size = 0x8000, scoped, tag = 'scratch operand']
  #allocation3 [shape = 'f32[73,324]{1,0:T(8,128)}', space=vmem, size = 0x1e000, scoped, tag = 'scratch operand']
  %s0 = inlined_call_operand.vmem [shape: f32[2,4,256], index: 0, kind: input, shape index: {}]
  %s1 = inlined_call_operand.vmem [shape: f32[8,73], index: 1, kind: input, shape index: {}]
  %s2 = inlined_call_operand.vmem [shape: f32[8,72], index: 2, kind: input, shape index: {}]
  %s3 = inlined_call_operand.vmem [shape: f32[8,324], index: 3, kind: input, shape index: {}]
  %s4 = inlined_call_operand.vmem [shape: f32[1,324], index: 4, kind: input, shape index: {}]
  %s5 = inlined_call_operand.vmem [shape: f32[324,64], index: 5, kind: input, shape index: {}]
  %s6 = inlined_call_operand.vmem [shape: f32[2,8,64], index: 6, kind: output, shape index: {}]
  %s7 = sld [smem:[#allocation0]]
  $region57: #{model_forward.1} parent=0
    _
  %s9 = ssub.s32 1, %s7
  %s10 = scalar_select 0, %s9, %s7
  loop: start=0, step=1, limit=4
  $region2: #{model_forward.1} parent=0 // loop_pre_header
    _
  $region3: #{model_forward.1} parent=0 // loop_header
    %s12 = sphi 0, %s16
    %p13 = scmp.ge.s32.totalorder %s12, 4
    %s22 = sphi 0, %s24
    %s25 = sphi 0, %s22
    %s26 = sphi 0, %s25
    %s42 = sphi 0, %s26
    %s46 = sphi 0, %s46
    %s48 = sphi 0, %s46
    %s49 = sphi 0, %s48
    %s63 = sphi 0, %s49
    %s67 = sphi 0, %s67
    %s69 = sphi 0, %s67
    %s70 = sphi 0, %s69
    %s84 = sphi 0, %s70
    %s88 = sphi 0, %s88
    %s90 = sphi 0, %s88
    %s91 = sphi 0, %s90
    %s105 = sphi 0, %s91
    %s109 = sphi 0, %s109
    %s111 = sphi 0, %s109
    %s112 = sphi 0, %s111
    %s126 = sphi 0, %s112
    %s130 = sphi 0, %s130
    %s132 = sphi 0, %s130
    %s133 = sphi 0, %s132
    %s147 = sphi 0, %s133
    %s153 = sphi 0, %s155
    %s156 = sphi 0, %s153
    %s157 = sphi 0, %s156
    %s173 = sphi 0, %s157
  $region4: #{model_forward.1} parent=0 // loop_header_branch
    %15 = sbr.rel (%p13) target = $region8
  $region5: #{model_forward.1} parent=0 // loop_body
    %s17 = ssub.s32 %s12, 1
    %s18 = ssub.s32 %s12, 2
    %s19 = sadd.s32 %s12, 1
    %s20 = ssub.s32 %s12, %s19
    %p21 = scmp.eq.s32.totalorder %s20, 0
    %s23 = sadd.s32 %s22, 1
    %s24 = scalar_select %p21, %s22, %s23
    %p27 = pneg %p21
    %p28 = scmp.eq.s32.totalorder %s12, 1
    %p29 = por %p27, %p28
    %p30 = scmp.ne.s32.totalorder %s22, %s25
    %p31 = scmp.eq.s32.totalorder %s12, 0
    %p32 = por %p30, %p31
    %p33 = scmp.ne.s32.totalorder %s22, %s25
    %p34 = scmp.eq.s32.totalorder %s17, 1
    %p35 = por %p33, %p34
    %p36 = scmp.ne.s32.totalorder %s25, %s26
    %p37 = scmp.eq.s32.totalorder %s17, 0
    %p38 = por %p36, %p37
    %p39 = scmp.ne.s32.totalorder %s25, %s26
    %p40 = scmp.eq.s32.totalorder %s18, 1
    %p41 = por %p39, %p40
    %p43 = scmp.ne.s32.totalorder %s26, %s42
    %p44 = scmp.eq.s32.totalorder %s18, 0
    %p45 = por %p43, %p44
    %s47 = sadd.s32 %s46, 1
    %p50 = scmp.eq.s32.totalorder %s12, 1
    %p51 = scmp.ne.s32.totalorder %s46, %s48
    %p52 = scmp.eq.s32.totalorder %s12, 0
    %p53 = por %p51, %p52
    %p54 = scmp.ne.s32.totalorder %s46, %s48
    %p55 = scmp.eq.s32.totalorder %s17, 1
    %p56 = por %p54, %p55
    %p57 = scmp.ne.s32.totalorder %s48, %s49
    %p58 = scmp.eq.s32.totalorder %s17, 0
    %p59 = por %p57, %p58
    %p60 = scmp.ne.s32.totalorder %s48, %s49
    %p61 = scmp.eq.s32.totalorder %s18, 1
    %p62 = por %p60, %p61
    %p64 = scmp.ne.s32.totalorder %s49, %s63
    %p65 = scmp.eq.s32.totalorder %s18, 0
    %p66 = por %p64, %p65
    %s68 = sadd.s32 %s67, 1
    %p71 = scmp.eq.s32.totalorder %s12, 1
    %p72 = scmp.ne.s32.totalorder %s67, %s69
    %p73 = scmp.eq.s32.totalorder %s12, 0
    %p74 = por %p72, %p73
    %p75 = scmp.ne.s32.totalorder %s67, %s69
    %p76 = scmp.eq.s32.totalorder %s17, 1
    %p77 = por %p75, %p76
    %p78 = scmp.ne.s32.totalorder %s69, %s70
    %p79 = scmp.eq.s32.totalorder %s17, 0
    %p80 = por %p78, %p79
    %p81 = scmp.ne.s32.totalorder %s69, %s70
    %p82 = scmp.eq.s32.totalorder %s18, 1
    %p83 = por %p81, %p82
    %p85 = scmp.ne.s32.totalorder %s70, %s84
    %p86 = scmp.eq.s32.totalorder %s18, 0
    %p87 = por %p85, %p86
    %s89 = sadd.s32 %s88, 1
    %p92 = scmp.eq.s32.totalorder %s12, 1
    %p93 = scmp.ne.s32.totalorder %s88, %s90
    %p94 = scmp.eq.s32.totalorder %s12, 0
    %p95 = por %p93, %p94
    %p96 = scmp.ne.s32.totalorder %s88, %s90
    %p97 = scmp.eq.s32.totalorder %s17, 1
    %p98 = por %p96, %p97
    %p99 = scmp.ne.s32.totalorder %s90, %s91
    %p100 = scmp.eq.s32.totalorder %s17, 0
    %p101 = por %p99, %p100
    %p102 = scmp.ne.s32.totalorder %s90, %s91
    %p103 = scmp.eq.s32.totalorder %s18, 1
    %p104 = por %p102, %p103
    %p106 = scmp.ne.s32.totalorder %s91, %s105
    %p107 = scmp.eq.s32.totalorder %s18, 0
    %p108 = por %p106, %p107
    %s110 = sadd.s32 %s109, 1
    %p113 = scmp.eq.s32.totalorder %s12, 1
    %p114 = scmp.ne.s32.totalorder %s109, %s111
    %p115 = scmp.eq.s32.totalorder %s12, 0
    %p116 = por %p114, %p115
    %p117 = scmp.ne.s32.totalorder %s109, %s111
    %p118 = scmp.eq.s32.totalorder %s17, 1
    %p119 = por %p117, %p118
    %p120 = scmp.ne.s32.totalorder %s111, %s112
    %p121 = scmp.eq.s32.totalorder %s17, 0
    %p122 = por %p120, %p121
    %p123 = scmp.ne.s32.totalorder %s111, %s112
    %p124 = scmp.eq.s32.totalorder %s18, 1
    %p125 = por %p123, %p124
    %p127 = scmp.ne.s32.totalorder %s112, %s126
    %p128 = scmp.eq.s32.totalorder %s18, 0
    %p129 = por %p127, %p128
    %s131 = sadd.s32 %s130, 1
    %p134 = scmp.eq.s32.totalorder %s12, 1
    %p135 = scmp.ne.s32.totalorder %s130, %s132
    %p136 = scmp.eq.s32.totalorder %s12, 0
    %p137 = por %p135, %p136
    %p138 = scmp.ne.s32.totalorder %s130, %s132
    %p139 = scmp.eq.s32.totalorder %s17, 1
    %p140 = por %p138, %p139
    %p141 = scmp.ne.s32.totalorder %s132, %s133
    %p142 = scmp.eq.s32.totalorder %s17, 0
    %p143 = por %p141, %p142
    %p144 = scmp.ne.s32.totalorder %s132, %s133
    %p145 = scmp.eq.s32.totalorder %s18, 1
    %p146 = por %p144, %p145
    %p148 = scmp.ne.s32.totalorder %s133, %s147
    %p149 = scmp.eq.s32.totalorder %s18, 0
    %p150 = por %p148, %p149
    %s151 = ssub.s32 %s12, %s19
    %p152 = scmp.eq.s32.totalorder %s151, 0
    %s154 = sadd.s32 %s153, 1
    %s155 = scalar_select %p152, %s153, %s154
    %p158 = pneg %p152
    %p159 = scmp.eq.s32.totalorder %s12, 1
    %p160 = por %p158, %p159
    %p161 = scmp.ne.s32.totalorder %s153, %s156
    %p162 = scmp.eq.s32.totalorder %s12, 0
    %p163 = por %p161, %p162
    %p164 = scmp.ne.s32.totalorder %s153, %s156
    %p165 = scmp.eq.s32.totalorder %s17, 1
    %p166 = por %p164, %p165
    %p167 = scmp.ne.s32.totalorder %s156, %s157
    %p168 = scmp.eq.s32.totalorder %s17, 0
    %p169 = por %p167, %p168
    %p170 = scmp.ne.s32.totalorder %s156, %s157
    %p171 = scmp.eq.s32.totalorder %s18, 1
    %p172 = por %p170, %p171
    %p174 = scmp.ne.s32.totalorder %s157, %s173
    %p175 = scmp.eq.s32.totalorder %s18, 0
    %p176 = por %p174, %p175
    %p177 = scmp.le.s32.totalorder 1, %s12
    %p178 = scmp.lt.s32.totalorder %s12, 3
    %p179 = pnand %p177, %p178
    %p180 = pneg %p179
    // Predicated region
    $region9: #{model_forward.1} parent=5 // pred_check
      _
    $region10: #{model_forward.1} parent=5 // pred_check_branch
      %182 = sbr.rel (%p179) target = $region12
    $region11: #{model_forward.1} parent=5 // pred_region
      %s183 = ssub.s32 %s12, 1
      // Predicated region
      $region13: #{model_forward.1} parent=11 // pred_check
        %p184 = pneg %p59
      $region14: #{model_forward.1} parent=11 // pred_check_branch
        %186 = sbr.rel (%p184) target = $region16
      $region15: #{model_forward.1} parent=11 // pred_region
        _
      $region16: #{model_forward.1} parent=11 // pred_fallthru
        _
      // Predicated region
      $region17: #{model_forward.1} parent=11 // pred_check
        %p187 = pneg %p80
      $region18: #{model_forward.1} parent=11 // pred_check_branch
        %189 = sbr.rel (%p187) target = $region20
      $region19: #{model_forward.1} parent=11 // pred_region
        _
      $region20: #{model_forward.1} parent=11 // pred_fallthru
        _
      // Predicated region
      $region21: #{model_forward.1} parent=11 // pred_check
        %p190 = pneg %p101
      $region22: #{model_forward.1} parent=11 // pred_check_branch
        %192 = sbr.rel (%p190) target = $region24
      $region23: #{model_forward.1} parent=11 // pred_region
        _
      $region24: #{model_forward.1} parent=11 // pred_fallthru
        _
      // Predicated region
      $region25: #{model_forward.1} parent=11 // pred_check
        %p193 = pneg %p122
      $region26: #{model_forward.1} parent=11 // pred_check_branch
        %195 = sbr.rel (%p193) target = $region28
      $region27: #{model_forward.1} parent=11 // pred_region
        _
      $region28: #{model_forward.1} parent=11 // pred_fallthru
        _
      // Predicated region
      $region29: #{model_forward.1} parent=11 // pred_check
        %p196 = pneg %p143
      $region30: #{model_forward.1} parent=11 // pred_check_branch
        %198 = sbr.rel (%p196) target = $region32
      $region31: #{model_forward.1} parent=11 // pred_region
        _
      $region32: #{model_forward.1} parent=11 // pred_fallthru
        _
    $region12: #{model_forward.1} parent=5 // pred_fallthru
      _
    %p199 = scmp.lt.s32.totalorder %s12, 2
    // Predicated region
    $region33: #{model_forward.1} parent=5 // pred_check
      %p200 = pneg %p199
    $region34: #{model_forward.1} parent=5 // pred_check_branch
      %202 = sbr.rel (%p200) target = $region36
    $region35: #{model_forward.1} parent=5 // pred_region
      // Predicated region
      $region37: #{model_forward.1} parent=35 // pred_check
        %p203 = pneg %p32
      $region38: #{model_forward.1} parent=35 // pred_check_branch
        %205 = sbr.rel (%p203) target = $region40
      $region39: #{model_forward.1} parent=35 // pred_region
        %p206 = scmp.lt.s32.totalorder %s12, 1
        %s207 = scalar_select %p206, %s12, 1
        %s208 = smul.addr %s207, 2
        %s209 = smul.addr %s208, 4
        %s210 = scalar_lea.vmem %s0, %s209
      $region40: #{model_forward.1} parent=35 // pred_fallthru
        _
    $region36: #{model_forward.1} parent=5 // pred_fallthru
      _
    %p211 = scmp.le.s32.totalorder 1, %s12
    %p212 = scmp.lt.s32.totalorder %s12, 3
    %p213 = pnand %p211, %p212
    %p214 = pneg %p213
    // Predicated region
    $region41: #{model_forward.1} parent=5 // pred_check
      _
    $region42: #{model_forward.1} parent=5 // pred_check_branch
      %216 = sbr.rel (%p213) target = $region44
    $region43: #{model_forward.1} parent=5 // pred_region
      %s217 = ssub.s32 %s12, 1
      %p218 = scmp.lt.s32.totalorder %s17, 1
      %s219 = scalar_select %p218, %s17, 1
      %s220 = smul.addr %s219, 2
      %s221 = smul.addr %s220, 4
      %s222 = scalar_lea.vmem %s0, %s221
      %p223 = pneg %p38
      %p224 = pneg %p35
      %p225 = pneg %p59
      %p226 = pneg %p56
      %p227 = pneg %p80
      %p228 = pneg %p77
      %p229 = pneg %p101
      %p230 = pneg %p98
      %p231 = pneg %p122
      %p232 = pneg %p119
      %p233 = pneg %p143
      %p234 = pneg %p140
      %p235 = pneg %p169
      %p236 = pneg %p166
      %p237 = scmp.lt.s32.totalorder %s17, 1
      %s238 = scalar_select %p237, %s17, 1
      %s239 = smul.addr %s238, 8
      %s240 = scalar_lea.vmem %s6, %s239
      %p241 = scmp.lt.s32.totalorder %s17, 1
      %s242 = scalar_select %p241, %s17, 1
      %s243 = smul.addr %s242, 2
      %s244 = smul.addr %s243, 4
      %s245 = scalar_lea.vmem %s0, %s244
      %p246 = scmp.lt.s32.totalorder %s17, 1
      %s247 = scalar_select %p246, %s17, 1
      %s248 = smul.addr %s247, 8
      %s249 = scalar_lea.vmem %s6, %s248
      %250 = vst [vmem:[#allocation2] sm:$0xff] 0.0
      %251 = vst [vmem:[#allocation2 + $0x8] sm:$0xff] 0.0
      %252 = vst [vmem:[#allocation2 + $0x10] sm:$0xff] 0.0
      %vm253 = vcmask 31744
      %254 = vst.msk [vmem:[#allocation2 + $0x18] sm:$0xff] %vm253, 0.0
      %255 = vst [vmem:[#allocation2 + $0x20] sm:$0xff] 0.0
      %256 = vst [vmem:[#allocation2 + $0x28] sm:$0xff] 0.0
      %257 = vst [vmem:[#allocation2 + $0x30] sm:$0xff] 0.0
      %258 = vst.msk [vmem:[#allocation2 + $0x38] sm:$0xff] %vm253, 0.0
      %v259 = vlaneseq
      %vm260 = vcmp.ge.s32.totalorder %v259, 0
      %vm261 = vcmp.lt.s32.totalorder %v259, 324
      %vm262 = vmand %vm260, %vm261
      %s263 = scalar_lea.vmem [#allocation3], 216
      %264 = vst.msk [vmem:[%s263] ss:$8 sm:$0x7] %vm262, 1.0
      %265 = vst.msk [vmem:[%s263] ss:$8 sm:$0x0] %vm262, 1.0
      %v266 = vld [vmem:[%s245] sm:$0xf]
      %268 = vrot.lane.b32.xlu0 %v266, 51
      %v269 = vpop.permute.xlu0 %268
      %vm271 = vcmask 544152
      %272 = vst.msk [vmem:[#allocation2] sm:$0xf] %vm271, %v269
      %v273 = vld [vmem:[%s245] sm:$0xf]
      %275 = vrot.lane.b32.xlu0 %v273, 53
      %v276 = vpop.permute.xlu0 %275
      %vm278 = vcmask 691752
      %279 = vst.msk [vmem:[#allocation2] sm:$0xf] %vm278, %v276
      %v280 = vld [vmem:[%s245] sm:$0xf]
      %282 = vrot.lane.b32.xlu0 %v280, 55
      %v283 = vpop.permute.xlu0 %282
      %vm285 = vcmask 839352
      %286 = vst.msk [vmem:[#allocation2] sm:$0xf] %vm285, %v283
      %v287 = vld [vmem:[%s245] sm:$0xf]
      %289 = vrot.lane.b32.xlu0 %v287, 57
      %v290 = vpop.permute.xlu0 %289
      %vm292 = vcmask 986952
      %293 = vst.msk [vmem:[#allocation2] sm:$0xf] %vm292, %v290
      %v294 = vld [vmem:[%s245] sm:$0xf]
      %296 = vrot.lane.b32.xlu0 %v294, 59
      %v297 = vpop.permute.xlu0 %296
      %vm299 = vcmask 1044440
      %300 = vst.msk [vmem:[#allocation2] sm:$0xf] %vm299, %v297
      %vm301 = vcmask 84992
      %302 = vst.msk [vmem:[#allocation2 + $0x8] sm:$0xf] %vm301, %v297
      %v303 = vld [vmem:[%s245] sm:$0xf]
      %305 = vrot.lane.b32.xlu0 %v303, 61
      %v306 = vpop.permute.xlu0 %305
      %vm308 = vcmask 232552
      %309 = vst.msk [vmem:[#allocation2 + $0x8] sm:$0xf] %vm308, %v306
      %v310 = vld [vmem:[%s245] sm:$0xf]
      %312 = vrot.lane.b32.xlu0 %v310, 63
      %v313 = vpop.permute.xlu0 %312
      %vm315 = vcmask 380152
      %316 = vst.msk [vmem:[#allocation2 + $0x8] sm:$0xf] %vm315, %v313
      %v317 = vld [vmem:[%s245] sm:$0xf]
      %319 = vrot.lane.b32.xlu0 %v317, 65
      %v320 = vpop.permute.xlu0 %319
      %vm322 = vcmask 527752
      %323 = vst.msk [vmem:[#allocation2 + $0x8] sm:$0xf] %vm322, %v320
      %v324 = vld [vmem:[%s245 + $0x4] sm:$0xf]
      %326 = vrot.lane.b32.xlu0 %v324, 67
      %v327 = vpop.permute.xlu0 %326
      %vm329 = vcmask 675352
      %330 = vst.msk [vmem:[#allocation2 + $0x8] sm:$0xf] %vm329, %v327
      %v331 = vld [vmem:[%s245 + $0x4] sm:$0xf]
      %333 = vrot.lane.b32.xlu0 %v331, 69
      %v334 = vpop.permute.xlu0 %333
      %vm336 = vcmask 822952
      %337 = vst.msk [vmem:[#allocation2 + $0x8] sm:$0xf] %vm336, %v334
      %v338 = vld [vmem:[%s245 + $0x4] sm:$0xf]
      %340 = vrot.lane.b32.xlu0 %v338, 71
      %v341 = vpop.permute.xlu0 %340
      %vm343 = vcmask 970552
      %344 = vst.msk [vmem:[#allocation2 + $0x8] sm:$0xf] %vm343, %v341
      %v345 = vld [vmem:[%s245 + $0x4] sm:$0xf]
      %347 = vrot.lane.b32.xlu0 %v345, 73
      %v348 = vpop.permute.xlu0 %347
      %vm350 = vcmask 1044424
      %351 = vst.msk [vmem:[#allocation2 + $0x8] sm:$0xf] %vm350, %v348
      %vm352 = vcmask 68608
      %353 = vst.msk [vmem:[#allocation2 + $0x10] sm:$0xf] %vm352, %v348
      %v354 = vld [vmem:[%s245 + $0x4] sm:$0xf]
      %356 = vrot.lane.b32.xlu0 %v354, 75
      %v357 = vpop.permute.xlu0 %356
      %vm359 = vcmask 216152
      %360 = vst.msk [vmem:[#allocation2 + $0x10] sm:$0xf] %vm359, %v357
      %v361 = vld [vmem:[%s245 + $0x4] sm:$0xf]
      %363 = vrot.lane.b32.xlu0 %v361, 77
      %v364 = vpop.permute.xlu0 %363
      %vm366 = vcmask 363752
      %367 = vst.msk [vmem:[#allocation2 + $0x10] sm:$0xf] %vm366, %v364
      %v368 = vld [vmem:[%s245 + $0x4] sm:$0xf]
      %370 = vrot.lane.b32.xlu0 %v368, 79
      %v371 = vpop.permute.xlu0 %370
      %vm373 = vcmask 511352
      %374 = vst.msk [vmem:[#allocation2 + $0x10] sm:$0xf] %vm373, %v371
      %v375 = vld [vmem:[%s245 + $0x4] sm:$0xf]
      %377 = vrot.lane.b32.xlu0 %v375, 81
      %v378 = vpop.permute.xlu0 %377
      %vm380 = vcmask 658952
      %381 = vst.msk [vmem:[#allocation2 + $0x10] sm:$0xf] %vm380, %v378
      %v382 = vld [vmem:[#allocation2] sm:$0xff]
      %v383 = vld [vmem:[#allocation2 + $0x8] sm:$0xff]
      %v384 = vld [vmem:[#allocation2 + $0x10] sm:$0xff]
      %388 = vrot.lane.b32.xlu0 %v382, 115
      %v389 = vpop.permute.xlu0 %388
      %390 = vrot.lane.b32.xlu0 %v383, 115
      %v391 = vpop.permute.xlu0 %390
      %392 = vrot.lane.b32.xlu0 %v384, 115
      %v393 = vpop.permute.xlu0 %392
      %vm394 = vcmask 941056
      %v395 = vsel %vm394, %v389, %v391
      %v396 = vsel %vm394, %v391, %v393
      %400 = vst [vmem:[#allocation3] sm:$0xff] %v395
      %401 = vst [vmem:[#allocation3 + $0x8] sm:$0xff] %v396
      %vm402 = vcmask 556032
      %403 = vst.msk [vmem:[#allocation3 + $0x10] sm:$0xff] %vm402, %v393
      %v404 = vld [vmem:[#allocation2] sm:$0xff]
      %v405 = vld [vmem:[#allocation2 + $0x8] sm:$0xff]
      %v406 = vld [vmem:[#allocation2 + $0x10] sm:$0xff]
      %410 = vrot.lane.b32.xlu0 %v404, 114
      %v411 = vpop.permute.xlu0 %410
      %412 = vrot.lane.b32.xlu0 %v405, 114
      %v413 = vpop.permute.xlu0 %412
      %414 = vrot.lane.b32.xlu0 %v406, 114
      %v415 = vpop.permute.xlu0 %414
      %vm416 = vcmask 932864
      %v417 = vsel %vm416, %v411, %v413
      %v418 = vsel %vm416, %v413, %v415
      %422 = vst [vmem:[#allocation3 + $0x18] sm:$0xff] %v417
      %423 = vst [vmem:[#allocation3 + $0x20] sm:$0xff] %v418
      %424 = vst.msk [vmem:[#allocation3 + $0x28] sm:$0xff] %vm402, %v415
      %v425 = vld [vmem:[#allocation2] sm:$0xff]
      %v426 = vld [vmem:[#allocation2 + $0x8] sm:$0xff]
      %v427 = vld [vmem:[#allocation2 + $0x10] sm:$0xff]
      %431 = vrot.lane.b32.xlu0 %v425, 113
      %v432 = vpop.permute.xlu0 %431
      %433 = vrot.lane.b32.xlu0 %v426, 113
      %v434 = vpop.permute.xlu0 %433
      %435 = vrot.lane.b32.xlu0 %v427, 113
      %v436 = vpop.permute.xlu0 %435
      %vm437 = vcmask 924672
      %v438 = vsel %vm437, %v432, %v434
      %v439 = vsel %vm437, %v434, %v436
      %443 = vst [vmem:[#allocation3 + $0x30] sm:$0xff] %v438
      %444 = vst [vmem:[#allocation3 + $0x38] sm:$0xff] %v439
      %445 = vst.msk [vmem:[#allocation3 + $0x40] sm:$0xff] %vm402, %v436
      %v446 = vld [vmem:[#allocation2] sm:$0xff]
      %v447 = vld [vmem:[#allocation2 + $0x8] sm:$0xff]
      %v448 = vld [vmem:[#allocation2 + $0x10] sm:$0xff]
      %452 = vrot.lane.b32.xlu0 %v446, 97
      %v453 = vpop.permute.xlu0 %452
      %454 = vrot.lane.b32.xlu0 %v447, 97
      %v455 = vpop.permute.xlu0 %454
      %456 = vrot.lane.b32.xlu0 %v448, 97
      %v457 = vpop.permute.xlu0 %456
      %vm458 = vcmask 793600
      %v459 = vsel %vm458, %v453, %v455
      %v460 = vsel %vm458, %v455, %v457
      %464 = vst [vmem:[#allocation3 + $0x48] sm:$0xff] %v459
      %465 = vst [vmem:[#allocation3 + $0x50] sm:$0xff] %v460
      %466 = vst.msk [vmem:[#allocation3 + $0x58] sm:$0xff] %vm402, %v457
      %v467 = vld [vmem:[#allocation2] sm:$0xff]
      %v468 = vld [vmem:[#allocation2 + $0x8] sm:$0xff]
      %v469 = vld [vmem:[#allocation2 + $0x10] sm:$0xff]
      %473 = vrot.lane.b32.xlu0 %v467, 96
      %v474 = vpop.permute.xlu0 %473
      %475 = vrot.lane.b32.xlu0 %v468, 96
      %v476 = vpop.permute.xlu0 %475
      %477 = vrot.lane.b32.xlu0 %v469, 96
      %v478 = vpop.permute.xlu0 %477
      %vm479 = vcmask 785408
      %v480 = vsel %vm479, %v474, %v476
      %v481 = vsel %vm479, %v476, %v478
      %485 = vst [vmem:[#allocation3 + $0x60] sm:$0xff] %v480
      %486 = vst [vmem:[#allocation3 + $0x68] sm:$0xff] %v481
      %487 = vst.msk [vmem:[#allocation3 + $0x70] sm:$0xff] %vm402, %v478
      %v488 = vld [vmem:[#allocation2] sm:$0xff]
      %v489 = vld [vmem:[#allocation2 + $0x8] sm:$0xff]
      %v490 = vld [vmem:[#allocation2 + $0x10] sm:$0xff]
      %494 = vrot.lane.b32.xlu0 %v488, 95
      %v495 = vpop.permute.xlu0 %494
      %496 = vrot.lane.b32.xlu0 %v489, 95
      %v497 = vpop.permute.xlu0 %496
      %498 = vrot.lane.b32.xlu0 %v490, 95
      %v499 = vpop.permute.xlu0 %498
      %vm500 = vcmask 777216
      %v501 = vsel %vm500, %v495, %v497
      %v502 = vsel %vm500, %v497, %v499
      %506 = vst [vmem:[#allocation3 + $0x78] sm:$0xff] %v501
      %507 = vst [vmem:[#allocation3 + $0x80] sm:$0xff] %v502
      %508 = vst.msk [vmem:[#allocation3 + $0x88] sm:$0xff] %vm402, %v499
      %v509 = vld [vmem:[#allocation2] sm:$0xff]
      %v510 = vld [vmem:[#allocation2 + $0x8] sm:$0xff]
      %v511 = vld [vmem:[#allocation2 + $0x10] sm:$0xff]
      %515 = vrot.lane.b32.xlu0 %v509, 79
      %v516 = vpop.permute.xlu0 %515
      %517 = vrot.lane.b32.xlu0 %v510, 79
      %v518 = vpop.permute.xlu0 %517
      %519 = vrot.lane.b32.xlu0 %v511, 79
      %v520 = vpop.permute.xlu0 %519
      %vm521 = vcmask 646144
      %v522 = vsel %vm521, %v516, %v518
      %v523 = vsel %vm521, %v518, %v520
      %527 = vst [vmem:[#allocation3 + $0x90] sm:$0xff] %v522
      %528 = vst [vmem:[#allocation3 + $0x98] sm:$0xff] %v523
      %529 = vst.msk [vmem:[#allocation3 + $0xa0] sm:$0xff] %vm402, %v520
      %v530 = vld [vmem:[#allocation2] sm:$0xff]
      %v531 = vld [vmem:[#allocation2 + $0x8] sm:$0xff]
      %v532 = vld [vmem:[#allocation2 + $0x10] sm:$0xff]
      %536 = vrot.lane.b32.xlu0 %v530, 78
      %v537 = vpop.permute.xlu0 %536
      %538 = vrot.lane.b32.xlu0 %v531, 78
      %v539 = vpop.permute.xlu0 %538
      %540 = vrot.lane.b32.xlu0 %v532, 78
      %v541 = vpop.permute.xlu0 %540
      %vm542 = vcmask 637952
      %v543 = vsel %vm542, %v537, %v539
      %v544 = vsel %vm542, %v539, %v541
      %548 = vst [vmem:[#allocation3 + $0xa8] sm:$0xff] %v543
      %549 = vst [vmem:[#allocation3 + $0xb0] sm:$0xff] %v544
      %550 = vst.msk [vmem:[#allocation3 + $0xb8] sm:$0xff] %vm402, %v541
      %v551 = vld [vmem:[#allocation2] sm:$0xff]
      %v552 = vld [vmem:[#allocation2 + $0x8] sm:$0xff]
      %v553 = vld [vmem:[#allocation2 + $0x10] sm:$0xff]
      %557 = vrot.lane.b32.xlu0 %v551, 77
      %v558 = vpop.permute.xlu0 %557
      %559 = vrot.lane.b32.xlu0 %v552, 77
      %v560 = vpop.permute.xlu0 %559
      %561 = vrot.lane.b32.xlu0 %v553, 77
      %v562 = vpop.permute.xlu0 %561
      %vm563 = vcmask 629760
      %v564 = vsel %vm563, %v558, %v560
      %v565 = vsel %vm563, %v560, %v562
      %569 = vst [vmem:[#allocation3 + $0xc0] sm:$0xff] %v564
      %570 = vst [vmem:[#allocation3 + $0xc8] sm:$0xff] %v565
      %571 = vst.msk [vmem:[#allocation3 + $0xd0] sm:$0xff] %vm402, %v562
      %v572 = vld [vmem:[%s1] sm:$0xff]
      %v573 = vld [vmem:[#allocation3] sm:$0xff]
      %v574 = vld [vmem:[#allocation3 + $0x8] sm:$0xff]
      %v575 = vld [vmem:[#allocation3 + $0x10] sm:$0xff]
      %v576 = vld [vmem:[#allocation3 + $0x18] sm:$0xff]
      %v577 = vld [vmem:[#allocation3 + $0x20] sm:$0xff]
      %v578 = vld [vmem:[#allocation3 + $0x28] sm:$0xff]
      %v579 = vld [vmem:[#allocation3 + $0x30] sm:$0xff]
      %v580 = vld [vmem:[#allocation3 + $0x38] sm:$0xff]
      %v581 = vld [vmem:[#allocation3 + $0x40] sm:$0xff]
      %v582 = vld [vmem:[#allocation3 + $0x48] sm:$0xff]
      %v583 = vld [vmem:[#allocation3 + $0x50] sm:$0xff]
      %v584 = vld [vmem:[#allocation3 + $0x58] sm:$0xff]
      %v585 = vld [vmem:[#allocation3 + $0x60] sm:$0xff]
      %v586 = vld [vmem:[#allocation3 + $0x68] sm:$0xff]
      %v587 = vld [vmem:[#allocation3 + $0x70] sm:$0xff]
      %v588 = vld [vmem:[#allocation3 + $0x78] sm:$0xff]
      %v589 = vld [vmem:[#allocation3 + $0x80] sm:$0xff]
      %v590 = vld [vmem:[#allocation3 + $0x88] sm:$0xff]
      %v591 = vld [vmem:[#allocation3 + $0x90] sm:$0xff]
      %v592 = vld [vmem:[#allocation3 + $0x98] sm:$0xff]
      %v593 = vld [vmem:[#allocation3 + $0xa0] sm:$0xff]
      %v594 = vld [vmem:[#allocation3 + $0xa8] sm:$0xff]
      %v595 = vld [vmem:[#allocation3 + $0xb0] sm:$0xff]
      %v596 = vld [vmem:[#allocation3 + $0xb8] sm:$0xff]
      %v597 = vld [vmem:[#allocation3 + $0xc0] sm:$0xff]
      %v598 = vld [vmem:[#allocation3 + $0xc8] sm:$0xff]
      %v599 = vld [vmem:[#allocation3 + $0xd0] sm:$0xff]
      %v600 = vld [vmem:[#allocation3 + $0xd8] sm:$0x1]
      %v601 = vld [vmem:[#allocation3 + $0xe0] sm:$0x1]
      %v602 = vld [vmem:[#allocation3 + $0xe8] sm:$0x1]
      %vm603 = vcmask 596992
      %v605 = vsel %vm603, %v572, 0
      %vm607 = vcmask 1040384
      %v609 = vsel %vm607, %v600, 0
      %v612 = vsel %vm607, %v601, 0
      %v615 = vsel %vm607, %v602, 0
      %617 = vmatprep.subr.mxu0 %v574
      %618 = vmatpush1.msra.mxu0 %v573
      %619 = vmatprep.subr.mxu0 %v577
      %620 = vmatpush1.msra.mxu0 %v576
      %621 = vmatprep.subr.mxu0 %v580
      %622 = vmatpush1.msra.mxu0 %v579
      %623 = vmatprep.subr.mxu0 %v583
      %624 = vmatpush1.msra.mxu0 %v582
      %625 = vmatprep.subr.mxu0 %v586
      %626 = vmatpush1.msra.mxu0 %v585
      %627 = vmatprep.subr.mxu0 %v589
      %628 = vmatpush1.msra.mxu0 %v588
      %629 = vmatprep.subr.mxu0 %v592
      %630 = vmatpush1.msra.mxu0 %v591
      %631 = vmatprep.subr.mxu0 %v595
      %632 = vmatpush1.msra.mxu0 %v594
      %633 = vmatprep.subr.mxu0 %v598
      %634 = vmatpush1.msra.mxu0 %v597
      %635 = vmatprep.subr.mxu0 %v612
      %636 = vmatpush1.msra.mxu0 %v609
      %637 = vmatprep.subr.mxu0 0.0
      %638 = vmatpush1.msra.mxu0 0.0
      %639 = vmatprep.subr.mxu0 0.0
      %640 = vmatpush1.msra.mxu0 0.0
      %641 = vmatprep.subr.mxu0 0.0
      %642 = vmatpush1.msra.mxu0 0.0
      %643 = vmatprep.subr.mxu0 0.0
      %644 = vmatpush1.msra.mxu0 0.0
      %645 = vmatprep.subr.mxu0 0.0
      %646 = vmatpush1.msra.mxu0 0.0
      %647 = vmatprep.subr.mxu0 0.0
      %648 = vmatpush1.msra.mxu0 0.0
      %649 = vmatprep.subr.mxu0 0.0
      %650 = vmatpush1.msra.mxu0 0.0
      %651 = vmatprep.subr.mxu0 0.0
      %652 = vmatpush1.msra.mxu0 0.0
      %653 = vmatprep.subr.mxu0 0.0
      %654 = vmatpush1.msra.mxu0 0.0
      %655 = vmatprep.subr.mxu0 0.0
      %656 = vmatpush1.msra.mxu0 0.0
      %657 = vmatprep.subr.mxu0 0.0
      %658 = vmatpush1.msra.mxu0 0.0
      %659 = vmatprep.subr.mxu0 0.0
      %660 = vmatpush1.msra.mxu0 0.0
      %661 = vmatprep.subr.mxu0 0.0
      %662 = vmatpush1.msra.mxu0 0.0
      %663 = vmatprep.subr.mxu0 0.0
      %664 = vmatpush1.msra.mxu0 0.0
      %665 = vmatprep.subr.mxu0 0.0
      %666 = vmatpush1.msra.mxu0 0.0
      %667 = vmatprep.subr.mxu0 0.0
      %668 = vmatpush1.msra.mxu0 0.0
      %669 = vmatprep.subr.mxu0 0.0
      %670 = vmatpush1.msra.mxu0 0.0
      %671 = vmatprep.subr.mxu0 0.0
      %672 = vmatpush1.msra.mxu0 0.0
      %673 = vmatprep.subr.mxu0 0.0
      %674 = vmatpush1.msra.mxu0 0.0
      %675 = vmatprep.subr.mxu0 0.0
      %676 = vmatpush1.msra.mxu0 0.0
      %677 = vmatprep.subr.mxu0 0.0
      %678 = vmatpush1.msra.mxu0 0.0
      %679 = vmatprep.subr.mxu0 0.0
      %680 = vmatpush1.msra.mxu0 0.0
      %681 = vmatprep.mubr.f32.mxu0 0.0
      %682 = vmatmul.mubr.f32.gmra.mrb[0].mxu0 %v605
      %v683 = vpop.f32.mrb[0].mxu0
      %v684 = vadd.f32 0.0, %v683
      %v685 = vpop.f32.mrb[0].mxu0
      %v686 = vadd.f32 0.0, %v685
      %687 = vdwg.mxu0
      %688 = vmatprep.subr.mxu0 0.0
      %689 = vmatpush1.msra.mxu0 %v575
      %690 = vmatprep.subr.mxu0 0.0
      %691 = vmatpush1.msra.mxu0 %v578
      %692 = vmatprep.subr.mxu0 0.0
      %693 = vmatpush1.msra.mxu0 %v581
      %694 = vmatprep.subr.mxu0 0.0
      %695 = vmatpush1.msra.mxu0 %v584
      %696 = vmatprep.subr.mxu0 0.0
      %697 = vmatpush1.msra.mxu0 %v587
      %698 = vmatprep.subr.mxu0 0.0
      %699 = vmatpush1.msra.mxu0 %v590
      %700 = vmatprep.subr.mxu0 0.0
      %701 = vmatpush1.msra.mxu0 %v593
      %702 = vmatprep.subr.mxu0 0.0
      %703 = vmatpush1.msra.mxu0 %v596
      %704 = vmatprep.subr.mxu0 0.0
      %705 = vmatpush1.msra.mxu0 %v599
      %706 = vmatprep.subr.mxu0 0.0
      %707 = vmatpush1.msra.mxu0 %v615
      %708 = vmatprep.subr.mxu0 0.0
      %709 = vmatpush1.msra.mxu0 0.0
      %710 = vmatprep.subr.mxu0 0.0
      %711 = vmatpush1.msra.mxu0 0.0
      %712 = vmatprep.subr.mxu0 0.0
      %713 = vmatpush1.msra.mxu0 0.0
      %714 = vmatprep.subr.mxu0 0.0
      %715 = vmatpush1.msra.mxu0 0.0
      %716 = vmatprep.subr.mxu0 0.0
      %717 = vmatpush1.msra.mxu0 0.0
      %718 = vmatprep.subr.mxu0 0.0
      %719 = vmatpush1.msra.mxu0 0.0
      %720 = vmatprep.subr.mxu0 0.0
      %721 = vmatpush1.msra.mxu0 0.0
      %722 = vmatprep.subr.mxu0 0.0
      %723 = vmatpush1.msra.mxu0 0.0
      %724 = vmatprep.subr.mxu0 0.0
      %725 = vmatpush1.msra.mxu0 0.0
      %726 = vmatprep.subr.mxu0 0.0
      %727 = vmatpush1.msra.mxu0 0.0
      %728 = vmatprep.subr.mxu0 0.0
      %729 = vmatpush1.msra.mxu0 0.0
      %730 = vmatprep.subr.mxu0 0.0
      %731 = vmatpush1.msra.mxu0 0.0
      %732 = vmatprep.subr.mxu0 0.0
      %733 = vmatpush1.msra.mxu0 0.0
      %734 = vmatprep.subr.mxu0 0.0
      %735 = vmatpush1.msra.mxu0 0.0
      %736 = vmatprep.subr.mxu0 0.0
      %737 = vmatpush1.msra.mxu0 0.0
      %738 = vmatprep.subr.mxu0 0.0
      %739 = vmatpush1.msra.mxu0 0.0
      %740 = vmatprep.subr.mxu0 0.0
      %741 = vmatpush1.msra.mxu0 0.0
      %742 = vmatprep.subr.mxu0 0.0
      %743 = vmatpush1.msra.mxu0 0.0
      %744 = vmatprep.subr.mxu0 0.0
      %745 = vmatpush1.msra.mxu0 0.0
      %746 = vmatprep.subr.mxu0 0.0
      %747 = vmatpush1.msra.mxu0 0.0
      %748 = vmatprep.subr.mxu0 0.0
      %749 = vmatpush1.msra.mxu0 0.0
      %750 = vmatprep.subr.mxu0 0.0
      %751 = vmatpush1.msra.mxu0 0.0
      %752 = vmatprep.mubr.f32.mxu0 0.0
      %753 = vmatmul.mubr.f32.gmra.mrb[0].mxu0 %v605
      %v754 = vpop.f32.mrb[0].mxu0
      %v755 = vadd.f32 0.0, %v754
      %v756 = vpop.f32.mrb[0].mxu0
      %757 = vdwg.mxu0
      %v758 = vmax.f32 %v684, 0.0
      %v759 = vmax.f32 %v686, 0.0
      %v760 = vmax.f32 %v755, 0.0
      %v761 = vld [vmem:[%s4] sm:$0x7]
      %v763 = vlaneseq
      %v764 = vshrl.u32 %v763, 7
      %v765 = vsub.s32 0, %v764
      %v766 = vrot.slane %v761, %v765
      %v767 = vlaneseq
      %v768 = vshrl.u32 %v767, 7
      %v769 = vsub.s32 1, %v768
      %v770 = vrot.slane %v761, %v769
      %v771 = vlaneseq
      %v772 = vshrl.u32 %v771, 7
      %v773 = vsub.s32 2, %v772
      %v774 = vrot.slane %v761, %v773
      %v778 = vmul.f32 %v758, %v766
      %v779 = vmul.f32 %v759, %v770
      %v780 = vmul.f32 %v760, %v774
      %784 = vrot.lane.b32.xlu0 %v778, 32
      %v785 = vpop.permute.xlu0 %784
      %786 = vrot.lane.b32.xlu0 %v779, 32
      %v787 = vpop.permute.xlu0 %786
      %788 = vrot.lane.b32.xlu0 %v780, 32
      %v789 = vpop.permute.xlu0 %788
      %vm790 = vcmask 261120
      %v791 = vsel %vm790, %v785, %v787
      %v792 = vsel %vm790, %v787, %v789
      %vm796 = vcmask 1047808
      %797 = vst.msk [vmem:[#allocation2] sm:$0xff] %vm796, %v785
      %798 = vst [vmem:[#allocation2 + $0x8] sm:$0xff] %v791
      %vm799 = vcmask 818176
      %800 = vst.msk [vmem:[#allocation2 + $0x10] sm:$0xff] %vm799, %v792
      %v801 = vld [vmem:[#allocation2] sm:$0xff]
      %v802 = vld [vmem:[#allocation2 + $0x8] sm:$0xff]
      %v803 = vld [vmem:[#allocation2 + $0x10] sm:$0xff]
      %807 = vrot.lane.b32.xlu0 %v801, 115
      %v808 = vpop.permute.xlu0 %807
      %809 = vrot.lane.b32.xlu0 %v802, 115
      %v810 = vpop.permute.xlu0 %809
      %811 = vrot.lane.b32.xlu0 %v803, 115
      %v812 = vpop.permute.xlu0 %811
      %v813 = vsel %vm394, %v808, %v810
      %v814 = vsel %vm394, %v810, %v812
      %818 = vst [vmem:[#allocation3] sm:$0xff] %v813
      %819 = vst [vmem:[#allocation3 + $0x8] sm:$0xff] %v814
      %820 = vst.msk [vmem:[#allocation3 + $0x10] sm:$0xff] %vm402, %v812
      %v821 = vld [vmem:[#allocation2] sm:$0xff]
      %v822 = vld [vmem:[#allocation2 + $0x8] sm:$0xff]
      %v823 = vld [vmem:[#allocation2 + $0x10] sm:$0xff]
      %827 = vrot.lane.b32.xlu0 %v821, 114
      %v828 = vpop.permute.xlu0 %827
      %829 = vrot.lane.b32.xlu0 %v822, 114
      %v830 = vpop.permute.xlu0 %829
      %831 = vrot.lane.b32.xlu0 %v823, 114
      %v832 = vpop.permute.xlu0 %831
      %v833 = vsel %vm416, %v828, %v830
      %v834 = vsel %vm416, %v830, %v832
      %838 = vst [vmem:[#allocation3 + $0x18] sm:$0xff] %v833
      %839 = vst [vmem:[#allocation3 + $0x20] sm:$0xff] %v834
      %840 = vst.msk [vmem:[#allocation3 + $0x28] sm:$0xff] %vm402, %v832
      %v841 = vld [vmem:[#allocation2] sm:$0xff]
      %v842 = vld [vmem:[#allocation2 + $0x8] sm:$0xff]
      %v843 = vld [vmem:[#allocation2 + $0x10] sm:$0xff]
      %847 = vrot.lane.b32.xlu0 %v841, 113
      %v848 = vpop.permute.xlu0 %847
      %849 = vrot.lane.b32.xlu0 %v842, 113
      %v850 = vpop.permute.xlu0 %849
      %851 = vrot.lane.b32.xlu0 %v843, 113
      %v852 = vpop.permute.xlu0 %851
      %v853 = vsel %vm437, %v848, %v850
      %v854 = vsel %vm437, %v850, %v852
      %858 = vst [vmem:[#allocation3 + $0x30] sm:$0xff] %v853
      %859 = vst [vmem:[#allocation3 + $0x38] sm:$0xff] %v854
      %860 = vst.msk [vmem:[#allocation3 + $0x40] sm:$0xff] %vm402, %v852
      %v861 = vld [vmem:[#allocation2] sm:$0xff]
      %v862 = vld [vmem:[#allocation2 + $0x8] sm:$0xff]
      %v863 = vld [vmem:[#allocation2 + $0x10] sm:$0xff]
      %867 = vrot.lane.b32.xlu0 %v861, 97
      %v868 = vpop.permute.xlu0 %867
      %869 = vrot.lane.b32.xlu0 %v862, 97
      %v870 = vpop.permute.xlu0 %869
      %871 = vrot.lane.b32.xlu0 %v863, 97
      %v872 = vpop.permute.xlu0 %871
      %v873 = vsel %vm458, %v868, %v870
      %v874 = vsel %vm458, %v870, %v872
      %878 = vst [vmem:[#allocation3 + $0x48] sm:$0xff] %v873
      %879 = vst [vmem:[#allocation3 + $0x50] sm:$0xff] %v874
      %880 = vst.msk [vmem:[#allocation3 + $0x58] sm:$0xff] %vm402, %v872
      %v881 = vld [vmem:[#allocation2] sm:$0xff]
      %v882 = vld [vmem:[#allocation2 + $0x8] sm:$0xff]
      %v883 = vld [vmem:[#allocation2 + $0x10] sm:$0xff]
      %887 = vrot.lane.b32.xlu0 %v881, 96
      %v888 = vpop.permute.xlu0 %887
      %889 = vrot.lane.b32.xlu0 %v882, 96
      %v890 = vpop.permute.xlu0 %889
      %891 = vrot.lane.b32.xlu0 %v883, 96
      %v892 = vpop.permute.xlu0 %891
      %v893 = vsel %vm479, %v888, %v890
      %v894 = vsel %vm479, %v890, %v892
      %898 = vst [vmem:[#allocation3 + $0x60] sm:$0xff] %v893
      %899 = vst [vmem:[#allocation3 + $0x68] sm:$0xff] %v894
      %900 = vst.msk [vmem:[#allocation3 + $0x70] sm:$0xff] %vm402, %v892
      %v901 = vld [vmem:[#allocation2] sm:$0xff]
      %v902 = vld [vmem:[#allocation2 + $0x8] sm:$0xff]
      %v903 = vld [vmem:[#allocation2 + $0x10] sm:$0xff]
      %907 = vrot.lane.b32.xlu0 %v901, 95
      %v908 = vpop.permute.xlu0 %907
      %909 = vrot.lane.b32.xlu0 %v902, 95
      %v910 = vpop.permute.xlu0 %909
      %911 = vrot.lane.b32.xlu0 %v903, 95
      %v912 = vpop.permute.xlu0 %911
      %v913 = vsel %vm500, %v908, %v910
      %v914 = vsel %vm500, %v910, %v912
      %918 = vst [vmem:[#allocation3 + $0x78] sm:$0xff] %v913
      %919 = vst [vmem:[#allocation3 + $0x80] sm:$0xff] %v914
      %920 = vst.msk [vmem:[#allocation3 + $0x88] sm:$0xff] %vm402, %v912
      %v921 = vld [vmem:[#allocation2] sm:$0xff]
      %v922 = vld [vmem:[#allocation2 + $0x8] sm:$0xff]
      %v923 = vld [vmem:[#allocation2 + $0x10] sm:$0xff]
      %927 = vrot.lane.b32.xlu0 %v921, 79
      %v928 = vpop.permute.xlu0 %927
      %929 = vrot.lane.b32.xlu0 %v922, 79
      %v930 = vpop.permute.xlu0 %929
      %931 = vrot.lane.b32.xlu0 %v923, 79
      %v932 = vpop.permute.xlu0 %931
      %v933 = vsel %vm521, %v928, %v930
      %v934 = vsel %vm521, %v930, %v932
      %938 = vst [vmem:[#allocation3 + $0x90] sm:$0xff] %v933
      %939 = vst [vmem:[#allocation3 + $0x98] sm:$0xff] %v934
      %940 = vst.msk [vmem:[#allocation3 + $0xa0] sm:$0xff] %vm402, %v932
      %v941 = vld [vmem:[#allocation2] sm:$0xff]
      %v942 = vld [vmem:[#allocation2 + $0x8] sm:$0xff]
      %v943 = vld [vmem:[#allocation2 + $0x10] sm:$0xff]
      %947 = vrot.lane.b32.xlu0 %v941, 78
      %v948 = vpop.permute.xlu0 %947
      %949 = vrot.lane.b32.xlu0 %v942, 78
      %v950 = vpop.permute.xlu0 %949
      %951 = vrot.lane.b32.xlu0 %v943, 78
      %v952 = vpop.permute.xlu0 %951
      %v953 = vsel %vm542, %v948, %v950
      %v954 = vsel %vm542, %v950, %v952
      %958 = vst [vmem:[#allocation3 + $0xa8] sm:$0xff] %v953
      %959 = vst [vmem:[#allocation3 + $0xb0] sm:$0xff] %v954
      %960 = vst.msk [vmem:[#allocation3 + $0xb8] sm:$0xff] %vm402, %v952
      %v961 = vld [vmem:[#allocation2] sm:$0xff]
      %v962 = vld [vmem:[#allocation2 + $0x8] sm:$0xff]
      %v963 = vld [vmem:[#allocation2 + $0x10] sm:$0xff]
      %967 = vrot.lane.b32.xlu0 %v961, 77
      %v968 = vpop.permute.xlu0 %967
      %969 = vrot.lane.b32.xlu0 %v962, 77
      %v970 = vpop.permute.xlu0 %969
      %971 = vrot.lane.b32.xlu0 %v963, 77
      %v972 = vpop.permute.xlu0 %971
      %v973 = vsel %vm563, %v968, %v970
      %v974 = vsel %vm563, %v970, %v972
      %978 = vst [vmem:[#allocation3 + $0xc0] sm:$0xff] %v973
      %979 = vst [vmem:[#allocation3 + $0xc8] sm:$0xff] %v974
      %980 = vst.msk [vmem:[#allocation3 + $0xd0] sm:$0xff] %vm402, %v972
      %v981 = vld [vmem:[%s2] sm:$0xff]
      %v982 = vld [vmem:[#allocation3] sm:$0xff]
      %v983 = vld [vmem:[#allocation3 + $0x8] sm:$0xff]
      %v984 = vld [vmem:[#allocation3 + $0x10] sm:$0xff]
      %v985 = vld [vmem:[#allocation3 + $0x18] sm:$0xff]
      %v986 = vld [vmem:[#allocation3 + $0x20] sm:$0xff]
      %v987 = vld [vmem:[#allocation3 + $0x28] sm:$0xff]
      %v988 = vld [vmem:[#allocation3 + $0x30] sm:$0xff]
      %v989 = vld [vmem:[#allocation3 + $0x38] sm:$0xff]
      %v990 = vld [vmem:[#allocation3 + $0x40] sm:$0xff]
      %v991 = vld [vmem:[#allocation3 + $0x48] sm:$0xff]
      %v992 = vld [vmem:[#allocation3 + $0x50] sm:$0xff]
      %v993 = vld [vmem:[#allocation3 + $0x58] sm:$0xff]
      %v994 = vld [vmem:[#allocation3 + $0x60] sm:$0xff]
      %v995 = vld [vmem:[#allocation3 + $0x68] sm:$0xff]
      %v996 = vld [vmem:[#allocation3 + $0x70] sm:$0xff]
      %v997 = vld [vmem:[#allocation3 + $0x78] sm:$0xff]
      %v998 = vld [vmem:[#allocation3 + $0x80] sm:$0xff]
      %v999 = vld [vmem:[#allocation3 + $0x88] sm:$0xff]
      %v1000 = vld [vmem:[#allocation3 + $0x90] sm:$0xff]
      %v1001 = vld [vmem:[#allocation3 + $0x98] sm:$0xff]
      %v1002 = vld [vmem:[#allocation3 + $0xa0] sm:$0xff]
      %v1003 = vld [vmem:[#allocation3 + $0xa8] sm:$0xff]
      %v1004 = vld [vmem:[#allocation3 + $0xb0] sm:$0xff]
      %v1005 = vld [vmem:[#allocation3 + $0xb8] sm:$0xff]
      %v1006 = vld [vmem:[#allocation3 + $0xc0] sm:$0xff]
      %v1007 = vld [vmem:[#allocation3 + $0xc8] sm:$0xff]
      %v1008 = vld [vmem:[#allocation3 + $0xd0] sm:$0xff]
      %v1009 = vld [vmem:[%s3] sm:$0xff]
      %v1010 = vld [vmem:[%s3 + $0x8] sm:$0xff]
      %v1011 = vld [vmem:[%s3 + $0x10] sm:$0xff]
      %vm1012 = vcmask 588800
      %v1014 = vsel %vm1012, %v981, 0
      %1016 = vmatprep.subr.mxu0 %v983
      %1017 = vmatpush1.msra.mxu0 %v982
      %1018 = vmatprep.subr.mxu0 %v986
      %1019 = vmatpush1.msra.mxu0 %v985
      %1020 = vmatprep.subr.mxu0 %v989
      %1021 = vmatpush1.msra.mxu0 %v988
      %1022 = vmatprep.subr.mxu0 %v992
      %1023 = vmatpush1.msra.mxu0 %v991
      %1024 = vmatprep.subr.mxu0 %v995
      %1025 = vmatpush1.msra.mxu0 %v994
      %1026 = vmatprep.subr.mxu0 %v998
      %1027 = vmatpush1.msra.mxu0 %v997
      %1028 = vmatprep.subr.mxu0 %v1001
      %1029 = vmatpush1.msra.mxu0 %v1000
      %1030 = vmatprep.subr.mxu0 %v1004
      %1031 = vmatpush1.msra.mxu0 %v1003
      %1032 = vmatprep.subr.mxu0 %v1007
      %1033 = vmatpush1.msra.mxu0 %v1006
      %1034 = vmatprep.subr.mxu0 0.0
      %1035 = vmatpush1.msra.mxu0 0.0
      %1036 = vmatprep.subr.mxu0 0.0
      %1037 = vmatpush1.msra.mxu0 0.0
      %1038 = vmatprep.subr.mxu0 0.0
      %1039 = vmatpush1.msra.mxu0 0.0
      %1040 = vmatprep.subr.mxu0 0.0
      %1041 = vmatpush1.msra.mxu0 0.0
      %1042 = vmatprep.subr.mxu0 0.0
      %1043 = vmatpush1.msra.mxu0 0.0
      %1044 = vmatprep.subr.mxu0 0.0
      %1045 = vmatpush1.msra.mxu0 0.0
      %1046 = vmatprep.subr.mxu0 0.0
      %1047 = vmatpush1.msra.mxu0 0.0
      %1048 = vmatprep.subr.mxu0 0.0
      %1049 = vmatpush1.msra.mxu0 0.0
      %1050 = vmatprep.subr.mxu0 0.0
      %1051 = vmatpush1.msra.mxu0 0.0
      %1052 = vmatprep.subr.mxu0 0.0
      %1053 = vmatpush1.msra.mxu0 0.0
      %1054 = vmatprep.subr.mxu0 0.0
      %1055 = vmatpush1.msra.mxu0 0.0
      %1056 = vmatprep.subr.mxu0 0.0
      %1057 = vmatpush1.msra.mxu0 0.0
      %1058 = vmatprep.subr.mxu0 0.0
      %1059 = vmatpush1.msra.mxu0 0.0
      %1060 = vmatprep.subr.mxu0 0.0
      %1061 = vmatpush1.msra.mxu0 0.0
      %1062 = vmatprep.subr.mxu0 0.0
      %1063 = vmatpush1.msra.mxu0 0.0
      %1064 = vmatprep.subr.mxu0 0.0
      %1065 = vmatpush1.msra.mxu0 0.0
      %1066 = vmatprep.subr.mxu0 0.0
      %1067 = vmatpush1.msra.mxu0 0.0
      %1068 = vmatprep.subr.mxu0 0.0
      %1069 = vmatpush1.msra.mxu0 0.0
      %1070 = vmatprep.subr.mxu0 0.0
      %1071 = vmatpush1.msra.mxu0 0.0
      %1072 = vmatprep.subr.mxu0 0.0
      %1073 = vmatpush1.msra.mxu0 0.0
      %1074 = vmatprep.subr.mxu0 0.0
      %1075 = vmatpush1.msra.mxu0 0.0
      %1076 = vmatprep.subr.mxu0 0.0
      %1077 = vmatpush1.msra.mxu0 0.0
      %1078 = vmatprep.subr.mxu0 0.0
      %1079 = vmatpush1.msra.mxu0 0.0
      %1080 = vmatprep.mubr.f32.mxu0 0.0
      %1081 = vmatmul.mubr.f32.gmra.mrb[0].mxu0 %v1014
      %v1082 = vpop.f32.mrb[0].mxu0
      %v1083 = vadd.f32 %v1009, %v1082
      %v1084 = vpop.f32.mrb[0].mxu0
      %v1085 = vadd.f32 %v1010, %v1084
      %1086 = vdwg.mxu0
      %1087 = vmatprep.subr.mxu0 0.0
      %1088 = vmatpush1.msra.mxu0 %v984
      %1089 = vmatprep.subr.mxu0 0.0
      %1090 = vmatpush1.msra.mxu0 %v987
      %1091 = vmatprep.subr.mxu0 0.0
      %1092 = vmatpush1.msra.mxu0 %v990
      %1093 = vmatprep.subr.mxu0 0.0
      %1094 = vmatpush1.msra.mxu0 %v993
      %1095 = vmatprep.subr.mxu0 0.0
      %1096 = vmatpush1.msra.mxu0 %v996
      %1097 = vmatprep.subr.mxu0 0.0
      %1098 = vmatpush1.msra.mxu0 %v999
      %1099 = vmatprep.subr.mxu0 0.0
      %1100 = vmatpush1.msra.mxu0 %v1002
      %1101 = vmatprep.subr.mxu0 0.0
      %1102 = vmatpush1.msra.mxu0 %v1005
      %1103 = vmatprep.subr.mxu0 0.0
      %1104 = vmatpush1.msra.mxu0 %v1008
      %1105 = vmatprep.subr.mxu0 0.0
      %1106 = vmatpush1.msra.mxu0 0.0
      %1107 = vmatprep.subr.mxu0 0.0
      %1108 = vmatpush1.msra.mxu0 0.0
      %1109 = vmatprep.subr.mxu0 0.0
      %1110 = vmatpush1.msra.mxu0 0.0
      %1111 = vmatprep.subr.mxu0 0.0
      %1112 = vmatpush1.msra.mxu0 0.0
      %1113 = vmatprep.subr.mxu0 0.0
      %1114 = vmatpush1.msra.mxu0 0.0
      %1115 = vmatprep.subr.mxu0 0.0
      %1116 = vmatpush1.msra.mxu0 0.0
      %1117 = vmatprep.subr.mxu0 0.0
      %1118 = vmatpush1.msra.mxu0 0.0
      %1119 = vmatprep.subr.mxu0 0.0
      %1120 = vmatpush1.msra.mxu0 0.0
      %1121 = vmatprep.subr.mxu0 0.0
      %1122 = vmatpush1.msra.mxu0 0.0
      %1123 = vmatprep.subr.mxu0 0.0
      %1124 = vmatpush1.msra.mxu0 0.0
      %1125 = vmatprep.subr.mxu0 0.0
      %1126 = vmatpush1.msra.mxu0 0.0
      %1127 = vmatprep.subr.mxu0 0.0
      %1128 = vmatpush1.msra.mxu0 0.0
      %1129 = vmatprep.subr.mxu0 0.0
      %1130 = vmatpush1.msra.mxu0 0.0
      %1131 = vmatprep.subr.mxu0 0.0
      %1132 = vmatpush1.msra.mxu0 0.0
      %1133 = vmatprep.subr.mxu0 0.0
      %1134 = vmatpush1.msra.mxu0 0.0
      %1135 = vmatprep.subr.mxu0 0.0
      %1136 = vmatpush1.msra.mxu0 0.0
      %1137 = vmatprep.subr.mxu0 0.0
      %1138 = vmatpush1.msra.mxu0 0.0
      %1139 = vmatprep.subr.mxu0 0.0
      %1140 = vmatpush1.msra.mxu0 0.0
      %1141 = vmatprep.subr.mxu0 0.0
      %1142 = vmatpush1.msra.mxu0 0.0
      %1143 = vmatprep.subr.mxu0 0.0
      %1144 = vmatpush1.msra.mxu0 0.0
      %1145 = vmatprep.subr.mxu0 0.0
      %1146 = vmatpush1.msra.mxu0 0.0
      %1147 = vmatprep.subr.mxu0 0.0
      %1148 = vmatpush1.msra.mxu0 0.0
      %1149 = vmatprep.subr.mxu0 0.0
      %1150 = vmatpush1.msra.mxu0 0.0
      %1151 = vmatprep.mubr.f32.mxu0 0.0
      %1152 = vmatmul.mubr.f32.gmra.mrb[0].mxu0 %v1014
      %v1153 = vpop.f32.mrb[0].mxu0
      %v1154 = vadd.f32 %v1011, %v1153
      %v1155 = vpop.f32.mrb[0].mxu0
      %1156 = vdwg.mxu0
      %v1157 = vadd.f32 %v1083, %v778
      %v1158 = vadd.f32 %v1085, %v779
      %v1159 = vadd.f32 %v1154, %v780
      %v1160 = vmax.f32 %v1157, 0.0
      %v1161 = vmax.f32 %v1158, 0.0
      %v1162 = vmax.f32 %v1159, 0.0
      %1166 = vrot.lane.b32.xlu0 %v1160, 32
      %v1167 = vpop.permute.xlu0 %1166
      %1168 = vrot.lane.b32.xlu0 %v1161, 32
      %v1169 = vpop.permute.xlu0 %1168
      %1170 = vrot.lane.b32.xlu0 %v1162, 32
      %v1171 = vpop.permute.xlu0 %1170
      %v1172 = vsel %vm790, %v1167, %v1169
      %v1173 = vsel %vm790, %v1169, %v1171
      %1177 = vst.msk [vmem:[#allocation2 + $0x20] sm:$0xff] %vm796, %v1167
      %1178 = vst [vmem:[#allocation2 + $0x28] sm:$0xff] %v1172
      %1179 = vst.msk [vmem:[#allocation2 + $0x30] sm:$0xff] %vm799, %v1173
      %v1180 = vld [vmem:[#allocation2 + $0x20] sm:$0xff]
      %v1181 = vld [vmem:[#allocation2 + $0x28] sm:$0xff]
      %v1182 = vld [vmem:[#allocation2 + $0x30] sm:$0xff]
      %1186 = vrot.lane.b32.xlu0 %v1180, 95
      %v1187 = vpop.permute.xlu0 %1186
      %1188 = vrot.lane.b32.xlu0 %v1181, 95
      %v1189 = vpop.permute.xlu0 %1188
      %1190 = vrot.lane.b32.xlu0 %v1182, 95
      %v1191 = vpop.permute.xlu0 %1190
      %v1192 = vsel %vm500, %v1187, %v1189
      %v1193 = vsel %vm500, %v1189, %v1191
      %v1197 = vmax.f32 %v1160, %v1192
      %v1198 = vmax.f32 %v1161, %v1193
      %v1199 = vmax.f32 %v1162, %v1191
      %1200 = vrot.lane.b32.xlu0 %v1180, 127
      %v1201 = vpop.permute.xlu0 %1200
      %1202 = vrot.lane.b32.xlu0 %v1181, 127
      %v1203 = vpop.permute.xlu0 %1202
      %1204 = vrot.lane.b32.xlu0 %v1182, 127
      %v1205 = vpop.permute.xlu0 %1204
      %vm1206 = vcmask 1039360
      %v1207 = vsel %vm1206, %v1201, %v1203
      %v1208 = vsel %vm1206, %v1203, %v1205
      %v1212 = vmax.f32 %v1180, %v1207
      %v1213 = vmax.f32 %v1181, %v1208
      %v1214 = vmax.f32 %v1182, %v1205
      %1218 = vrot.lane.b32.xlu0 %v1212, 78
      %v1219 = vpop.permute.xlu0 %1218
      %1220 = vrot.lane.b32.xlu0 %v1213, 78
      %v1221 = vpop.permute.xlu0 %1220
      %1222 = vrot.lane.b32.xlu0 %v1214, 78
      %v1223 = vpop.permute.xlu0 %1222
      %v1224 = vsel %vm542, %v1219, %v1221
      %v1225 = vsel %vm542, %v1221, %v1223
      %v1229 = vmax.f32 %v1197, %v1224
      %v1230 = vmax.f32 %v1198, %v1225
      %v1231 = vmax.f32 %v1199, %v1223
      %v1232 = vld [vmem:[%s5] sm:$0xff]
      %v1233 = vld [vmem:[%s5 + $0x8] sm:$0xff]
      %v1234 = vld [vmem:[%s5 + $0x10] sm:$0xff]
      %v1235 = vld [vmem:[%s5 + $0x18] sm:$0xff]
      %v1236 = vld [vmem:[%s5 + $0x20] sm:$0xff]
      %v1237 = vld [vmem:[%s5 + $0x28] sm:$0xff]
      %v1238 = vld [vmem:[%s5 + $0x30] sm:$0xff]
      %v1239 = vld [vmem:[%s5 + $0x38] sm:$0xff]
      %v1240 = vld [vmem:[%s5 + $0x40] sm:$0xff]
      %v1241 = vld [vmem:[%s5 + $0x48] sm:$0xff]
      %v1242 = vld [vmem:[%s5 + $0x50] sm:$0xff]
      %v1243 = vld [vmem:[%s5 + $0x58] sm:$0xff]
      %v1244 = vld [vmem:[%s5 + $0x60] sm:$0xff]
      %v1245 = vld [vmem:[%s5 + $0x68] sm:$0xff]
      %v1246 = vld [vmem:[%s5 + $0x70] sm:$0xff]
      %v1247 = vld [vmem:[%s5 + $0x78] sm:$0xff]
      %v1248 = vld [vmem:[%s5 + $0x80] sm:$0xff]
      %v1249 = vld [vmem:[%s5 + $0x88] sm:$0xff]
      %v1250 = vld [vmem:[%s5 + $0x90] sm:$0xff]
      %v1251 = vld [vmem:[%s5 + $0x98] sm:$0xff]
      %v1252 = vld [vmem:[%s5 + $0xa0] sm:$0xff]
      %v1253 = vld [vmem:[%s5 + $0xa8] sm:$0xff]
      %v1254 = vld [vmem:[%s5 + $0xb0] sm:$0xff]
      %v1255 = vld [vmem:[%s5 + $0xb8] sm:$0xff]
      %v1256 = vld [vmem:[%s5 + $0xc0] sm:$0xff]
      %v1257 = vld [vmem:[%s5 + $0xc8] sm:$0xff]
      %v1258 = vld [vmem:[%s5 + $0xd0] sm:$0xff]
      %v1259 = vld [vmem:[%s5 + $0xd8] sm:$0xff]
      %v1260 = vld [vmem:[%s5 + $0xe0] sm:$0xff]
      %v1261 = vld [vmem:[%s5 + $0xe8] sm:$0xff]
      %v1262 = vld [vmem:[%s5 + $0xf0] sm:$0xff]
      %v1263 = vld [vmem:[%s5 + $0xf8] sm:$0xff]
      %v1264 = vld [vmem:[%s5 + $0x100] sm:$0xff]
      %v1265 = vld [vmem:[%s5 + $0x108] sm:$0xff]
      %v1266 = vld [vmem:[%s5 + $0x110] sm:$0xff]
      %v1267 = vld [vmem:[%s5 + $0x118] sm:$0xff]
      %v1268 = vld [vmem:[%s5 + $0x120] sm:$0xff]
      %v1269 = vld [vmem:[%s5 + $0x128] sm:$0xff]
      %v1270 = vld [vmem:[%s5 + $0x130] sm:$0xff]
      %v1271 = vld [vmem:[%s5 + $0x138] sm:$0xff]
      %v1272 = vld [vmem:[%s5 + $0x140] sm:$0xf]
      %v1274 = vsel %vm402, %v1231, 0
      %vm1276 = vcmask 1043456
      %v1278 = vsel %vm1276, %v1272, 0
      %1280 = vmatprep.subr.mxu0 0.0
      %1281 = vmatpush1.msra.mxu0 %v1232
      %1282 = vmatprep.subr.mxu0 0.0
      %1283 = vmatpush1.msra.mxu0 %v1233
      %1284 = vmatprep.subr.mxu0 0.0
      %1285 = vmatpush1.msra.mxu0 %v1234
      %1286 = vmatprep.subr.mxu0 0.0
      %1287 = vmatpush1.msra.mxu0 %v1235
      %1288 = vmatprep.subr.mxu0 0.0
      %1289 = vmatpush1.msra.mxu0 %v1236
      %1290 = vmatprep.subr.mxu0 0.0
      %1291 = vmatpush1.msra.mxu0 %v1237
      %1292 = vmatprep.subr.mxu0 0.0
      %1293 = vmatpush1.msra.mxu0 %v1238
      %1294 = vmatprep.subr.mxu0 0.0
      %1295 = vmatpush1.msra.mxu0 %v1239
      %1296 = vmatprep.subr.mxu0 0.0
      %1297 = vmatpush1.msra.mxu0 %v1240
      %1298 = vmatprep.subr.mxu0 0.0
      %1299 = vmatpush1.msra.mxu0 %v1241
      %1300 = vmatprep.subr.mxu0 0.0
      %1301 = vmatpush1.msra.mxu0 %v1242
      %1302 = vmatprep.subr.mxu0 0.0
      %1303 = vmatpush1.msra.mxu0 %v1243
      %1304 = vmatprep.subr.mxu0 0.0
      %1305 = vmatpush1.msra.mxu0 %v1244
      %1306 = vmatprep.subr.mxu0 0.0
      %1307 = vmatpush1.msra.mxu0 %v1245
      %1308 = vmatprep.subr.mxu0 0.0
      %1309 = vmatpush1.msra.mxu0 %v1246
      %1310 = vmatprep.subr.mxu0 0.0
      %1311 = vmatpush1.msra.mxu0 %v1247
      %1312 = vmatprep.subr.mxu0 0.0
      %1313 = vmatpush1.msra.mxu0 %v1248
      %1314 = vmatprep.subr.mxu0 0.0
      %1315 = vmatpush1.msra.mxu0 %v1249
      %1316 = vmatprep.subr.mxu0 0.0
      %1317 = vmatpush1.msra.mxu0 %v1250
      %1318 = vmatprep.subr.mxu0 0.0
      %1319 = vmatpush1.msra.mxu0 %v1251
      %1320 = vmatprep.subr.mxu0 0.0
      %1321 = vmatpush1.msra.mxu0 %v1252
      %1322 = vmatprep.subr.mxu0 0.0
      %1323 = vmatpush1.msra.mxu0 %v1253
      %1324 = vmatprep.subr.mxu0 0.0
      %1325 = vmatpush1.msra.mxu0 %v1254
      %1326 = vmatprep.subr.mxu0 0.0
      %1327 = vmatpush1.msra.mxu0 %v1255
      %1328 = vmatprep.subr.mxu0 0.0
      %1329 = vmatpush1.msra.mxu0 %v1256
      %1330 = vmatprep.subr.mxu0 0.0
      %1331 = vmatpush1.msra.mxu0 %v1257
      %1332 = vmatprep.subr.mxu0 0.0
      %1333 = vmatpush1.msra.mxu0 %v1258
      %1334 = vmatprep.subr.mxu0 0.0
      %1335 = vmatpush1.msra.mxu0 %v1259
      %1336 = vmatprep.subr.mxu0 0.0
      %1337 = vmatpush1.msra.mxu0 %v1260
      %1338 = vmatprep.subr.mxu0 0.0
      %1339 = vmatpush1.msra.mxu0 %v1261
      %1340 = vmatprep.subr.mxu0 0.0
      %1341 = vmatpush1.msra.mxu0 %v1262
      %1342 = vmatprep.subr.mxu0 0.0
      %1343 = vmatpush1.msra.mxu0 %v1263
      %1344 = vmatprep.mubr.f32.mxu0 %v1230
      %1345 = vmatmul.mubr.f32.gmra.mrb[0].mxu0 %v1229
      %v1346 = vpop.f32.mrb[0].mxu0
      %v1347 = vadd.f32 0.0, %v1346
      %v1348 = vpop.f32.mrb[0].mxu0
      %1349 = vdwg.mxu0
      %1350 = vmatprep.subr.mxu0 0.0
      %1351 = vmatpush1.msra.mxu0 %v1264
      %1352 = vmatprep.subr.mxu0 0.0
      %1353 = vmatpush1.msra.mxu0 %v1265
      %1354 = vmatprep.subr.mxu0 0.0
      %1355 = vmatpush1.msra.mxu0 %v1266
      %1356 = vmatprep.subr.mxu0 0.0
      %1357 = vmatpush1.msra.mxu0 %v1267
      %1358 = vmatprep.subr.mxu0 0.0
      %1359 = vmatpush1.msra.mxu0 %v1268
      %1360 = vmatprep.subr.mxu0 0.0
      %1361 = vmatpush1.msra.mxu0 %v1269
      %1362 = vmatprep.subr.mxu0 0.0
      %1363 = vmatpush1.msra.mxu0 %v1270
      %1364 = vmatprep.subr.mxu0 0.0
      %1365 = vmatpush1.msra.mxu0 %v1271
      %1366 = vmatprep.subr.mxu0 0.0
      %1367 = vmatpush1.msra.mxu0 %v1278
      %1368 = vmatprep.subr.mxu0 0.0
      %1369 = vmatpush1.msra.mxu0 0.0
      %1370 = vmatprep.subr.mxu0 0.0
      %1371 = vmatpush1.msra.mxu0 0.0
      %1372 = vmatprep.subr.mxu0 0.0
      %1373 = vmatpush1.msra.mxu0 0.0
      %1374 = vmatprep.subr.mxu0 0.0
      %1375 = vmatpush1.msra.mxu0 0.0
      %1376 = vmatprep.subr.mxu0 0.0
      %1377 = vmatpush1.msra.mxu0 0.0
      %1378 = vmatprep.subr.mxu0 0.0
      %1379 = vmatpush1.msra.mxu0 0.0
      %1380 = vmatprep.subr.mxu0 0.0
      %1381 = vmatpush1.msra.mxu0 0.0
      %1382 = vmatprep.subr.mxu0 0.0
      %1383 = vmatpush1.msra.mxu0 0.0
      %1384 = vmatprep.subr.mxu0 0.0
      %1385 = vmatpush1.msra.mxu0 0.0
      %1386 = vmatprep.subr.mxu0 0.0
      %1387 = vmatpush1.msra.mxu0 0.0
      %1388 = vmatprep.subr.mxu0 0.0
      %1389 = vmatpush1.msra.mxu0 0.0
      %1390 = vmatprep.subr.mxu0 0.0
      %1391 = vmatpush1.msra.mxu0 0.0
      %1392 = vmatprep.subr.mxu0 0.0
      %1393 = vmatpush1.msra.mxu0 0.0
      %1394 = vmatprep.subr.mxu0 0.0
      %1395 = vmatpush1.msra.mxu0 0.0
      %1396 = vmatprep.subr.mxu0 0.0
      %1397 = vmatpush1.msra.mxu0 0.0
      %1398 = vmatprep.subr.mxu0 0.0
      %1399 = vmatpush1.msra.mxu0 0.0
      %1400 = vmatprep.subr.mxu0 0.0
      %1401 = vmatpush1.msra.mxu0 0.0
      %1402 = vmatprep.subr.mxu0 0.0
      %1403 = vmatpush1.msra.mxu0 0.0
      %1404 = vmatprep.subr.mxu0 0.0
      %1405 = vmatpush1.msra.mxu0 0.0
      %1406 = vmatprep.subr.mxu0 0.0
      %1407 = vmatpush1.msra.mxu0 0.0
      %1408 = vmatprep.subr.mxu0 0.0
      %1409 = vmatpush1.msra.mxu0 0.0
      %1410 = vmatprep.subr.mxu0 0.0
      %1411 = vmatpush1.msra.mxu0 0.0
      %1412 = vmatprep.subr.mxu0 0.0
      %1413 = vmatpush1.msra.mxu0 0.0
      %1414 = vmatprep.mubr.f32.mxu0 0.0
      %1415 = vmatmul.mubr.f32.gmra.mrb[0].mxu0 %v1274
      %v1416 = vpop.f32.mrb[0].mxu0
      %v1417 = vadd.f32 %v1347, %v1416
      %v1418 = vpop.f32.mrb[0].mxu0
      %1419 = vdwg.mxu0
      %vm1420 = vcmask 523264
      %v1421 = vsel %vm1420, %v1417, -inf
      %1422 = vmax.xlane.f32.xlu0 %v1421
      %v1423 = vpop.xlane.xlu0 %1422
      %v1424 = vsub.f32 %v1417, %v1423
      %v1425 = vmul.f32 %v1424, 1.442695
      %v1426 = vpow.pop %v1425
      %v1427 = vsel %vm1420, %v1426, 0.0
      %1428 = vadd.xlane.f32.xlu0 %v1427
      %v1429 = vpop.xlane.xlu0 %1428
      %v1430 = vrcp.pop %v1429
      %v1431 = vmul.f32 %v1426, %v1430
      %1432 = vst.msk [vmem:[%s249] sm:$0xff] %vm1420, %v1431
      %p1433 = scmp.lt.s32.totalorder %s17, 1
      %s1434 = scalar_select %p1433, %s17, 1
      %s1435 = smul.addr %s1434, 8
      %s1436 = scalar_lea.vmem %s6, %s1435
      // Predicated region
      $region45: #{model_forward.1} parent=43 // pred_check
        %p1437 = pneg %p166
      $region46: #{model_forward.1} parent=43 // pred_check_branch
        %1439 = sbr.rel (%p1437) target = $region48
      $region47: #{model_forward.1} parent=43 // pred_region
        _
      $region48: #{model_forward.1} parent=43 // pred_fallthru
        _
    $region44: #{model_forward.1} parent=5 // pred_fallthru
      _
    %p1440 = scmp.le.s32.totalorder 2, %s12
    // Predicated region
    $region49: #{model_forward.1} parent=5 // pred_check
      %p1441 = pneg %p1440
    $region50: #{model_forward.1} parent=5 // pred_check_branch
      %1443 = sbr.rel (%p1441) target = $region52
    $region51: #{model_forward.1} parent=5 // pred_region
      %s1444 = ssub.s32 %s12, 2
      // Predicated region
      $region53: #{model_forward.1} parent=51 // pred_check
        %p1445 = pneg %p172
      $region54: #{model_forward.1} parent=51 // pred_check_branch
        %1447 = sbr.rel (%p1445) target = $region56
      $region55: #{model_forward.1} parent=51 // pred_region
        %p1448 = scmp.lt.s32.totalorder %s18, 1
        %s1449 = scalar_select %p1448, %s18, 1
        %s1450 = smul.addr %s1449, 8
        %s1451 = scalar_lea.vmem %s6, %s1450
      $region56: #{model_forward.1} parent=51 // pred_fallthru
        _
    $region52: #{model_forward.1} parent=5 // pred_fallthru
      _
  $region6: #{model_forward.1} parent=0 // loop_footer
    %s16 = sadd.s32 1, %s12
  $region7: #{model_forward.1} parent=0 // loop_footer_branch
    %11 = sbr.rel target = $region3
  $region8: #{model_forward.1} parent=0 // loop_exit
    _

</llo_original>
